<compile_context>
chip_gen: v7x
topology: tpu7x:2x2x1
jax: 0.10.0
libtpu: 0.0.40
codegen_flags: <defaults>
</compile_context>

<pallas_src>
import math

import jax
import jax.numpy as jnp
from jax.experimental import pallas as pl
from jax.experimental.pallas import tpu as pltpu


def _round_up(v, m):
    return ((v + m - 1) // m) * m


def _fourier_kernel(x_ref, w_ref, p_ref, o_ref):
    # x_ref : (tile, K)       packed coords (K = 2 * pack)
    # w_ref : (K, lane_w)     block-diagonal 2*pi*P^T table (same block each step)
    # p_ref : (1, lane_w)     phase row (0 for sin half, pi/2 for cos half)
    # o_ref : (tile, lane_w)  packed output block
    x = x_ref[...]                               # (tile, K)
    k = x.shape[1]

    # Exact f32 projection on the VPU, unrolled over the K=8 packed coords.
    # Off-diagonal weight entries are exactly 0.0, so each output lane sees
    # exactly x0*w0 + x1*w1 (bitwise identical to the dense per-row formula).
    acc = x[:, 0:1] * w_ref[0:1, :]              # (tile, lane_w)
    for c in range(1, k):
        acc = acc + x[:, c:c+1] * w_ref[c:c+1, :]

    # Single lane-dense transcendental; phase folds cos into sin.
    o_ref[...] = jnp.sin(acc + p_ref[...]).astype(o_ref.dtype)


def pos_fourier_embedding(x, projection, *, tile_rows=1024):
    """x: (..., 2) float; projection: (out_dim//2, 2) float.

    Returns (..., out_dim) float32 with
        out = concat([sin(2*pi*x @ P^T), cos(2*pi*x @ P^T)], -1),
    matching the PyTorch module.
    """
    half, in_dim = projection.shape
    if in_dim != 2:
        # The PyTorch module reshapes to (-1, 2) unconditionally.
        raise ValueError(f"PosFourierEmbedding requires in_dim == 2, got {in_dim}")
    out_dim = 2 * half
    x_shape = x.shape

    x_flat = x.reshape(-1, in_dim).astype(jnp.float32)
    n = x_flat.shape[0]

    # How many output rows fit in 128 lanes (out_dim=32 -> pack=4).
    if out_dim % 128 == 0:
        pack = 1                      # already lane-dense
    elif 128 % out_dim == 0:
        pack = 128 // out_dim
    else:
        pack = 1                      # lane-sparse fallback; still correct
    lane_w = pack * out_dim
    k_in = pack * in_dim

    # Pad the row count so packed rows land on whole (8, 128) tiles.
    row_mult = 8 * pack
    n_pad = _round_up(max(n, 1), row_mult)
    if n_pad != n:
        x_flat = jnp.pad(x_flat, ((0, n_pad - n), (0, 0)))
    m = n_pad // pack

    # Free (contiguous, row-major) repack of the coords: (n_pad, 2) -> (m, 2*pack).
    x_packed = x_flat.reshape(m, k_in)

    # Fold 2*pi into the tiny weight and build the block-diagonal lane table
    # plus the phase row once on the host.
    w = (2.0 * math.pi) * projection.T.astype(jnp.float32)          # (2, half)
    w2 = jnp.concatenate([w, w], axis=1)                             # (2, out_dim)
    phase = jnp.concatenate(
        [jnp.zeros((half,), jnp.float32),
         jnp.full((half,), math.pi / 2.0, jnp.float32)])             # (out_dim,)
    w_big = jnp.zeros((k_in, lane_w), jnp.float32)
    for j in range(pack):
        w_big = w_big.at[in_dim * j:in_dim * (j + 1),
                         out_dim * j:out_dim * (j + 1)].set(w2)
    phase_big = jnp.tile(phase, pack).reshape(1, lane_w)

    # Packed-row tile: multiple of 8, capped to the (padded) input.
    tile = min(tile_rows, m)
    tile = max(8, (tile // 8) * 8)
    grid = (pl.cdiv(m, tile),)

    out_packed = pl.pallas_call(
        _fourier_kernel,
        out_shape=jax.ShapeDtypeStruct((m, lane_w), jnp.float32),
        grid_spec=pltpu.PrefetchScalarGridSpec(
            num_scalar_prefetch=0,
            grid=grid,
            in_specs=[
                pl.BlockSpec((tile, k_in), lambda i: (i, 0)),
                pl.BlockSpec((k_in, lane_w), lambda i: (0, 0)),
                pl.BlockSpec((1, lane_w), lambda i: (0, 0)),
            ],
            out_specs=pl.BlockSpec((tile, lane_w), lambda i: (i, 0)),
        ),
        compiler_params=pltpu.CompilerParams(
            # On v7x, pltpu.CORE_PARALLEL would shard this grid across both
            # TensorCores; the portable setting is kept since the packed
            # kernel is HBM-write-bound.
            dimension_semantics=("parallel",),
        ),
    )(x_packed, w_big, phase_big)

    # Free bitcast-reshape back to per-row layout; slice only if we padded.
    out_flat = out_packed.reshape(n_pad, out_dim)
    if n_pad != n:
        out_flat = out_flat[:n]
    return out_flat.reshape(*x_shape[:-1], out_dim)


if __name__ == "__main__":
    key = jax.random.PRNGKey(0)
    k_proj, k_x = jax.random.split(key)

    in_dim = 2
    out_dim = 32
    std = 4.0

    # Deterministic "randn * std" projection buffer, shape (out_dim//2, in_dim).
    projection = jax.random.normal(k_proj, (out_dim // 2, in_dim), jnp.float32) * std

    # Example positional input: batch=2, 16x16 spatial grid of 2-D coords.
    x = jax.random.normal(k_x, (2, 16, 16, in_dim), jnp.float32)

    out = pos_fourier_embedding(x, projection)
    out = jax.block_until_ready(out)

    # Pure-JAX exact-f32 element-wise reference of the module's math.
    w_ref = (2.0 * math.pi) * projection.T.astype(jnp.float32)          # (2, 16)
    x_flat = x.reshape(-1, in_dim).astype(jnp.float32)
    x_proj_ref = x_flat[:, 0:1] * w_ref[0:1, :] + x_flat[:, 1:2] * w_ref[1:2, :]
    ref = jnp.concatenate([jnp.sin(x_proj_ref), jnp.cos(x_proj_ref)], axis=-1)
    ref = ref.reshape(*x.shape[:-1], out_dim)

    assert out.shape == (2, 16, 16, out_dim), out.shape
    max_err = float(jnp.max(jnp.abs(out - ref)))
    assert jnp.allclose(out, ref, atol=1e-4, rtol=1e-4), max_err

    print("KERNEL_OK")
</pallas_src>

<mosaic_0001>
module attributes {stable_mosaic.version = 11 : i64} {
  func.func @_fourier_kernel(%arg0: i32, %arg1: memref<128x8xf32, #tpu.memory_space<vmem>>, %arg2: memref<8x128xf32, #tpu.memory_space<vmem>>, %arg3: memref<1x128xf32, #tpu.memory_space<vmem>>, %arg4: memref<128x128xf32, #tpu.memory_space<vmem>>) attributes {dimension_semantics = [#tpu.dimension_semantics<parallel>], iteration_bounds = array<i64: 1>, scalar_prefetch = 0 : i64, scratch_operands = 0 : i64, tpu.core_type = #tpu.core_type<tc>, window_params = [{transform_indices = @transform_0, window_bounds = array<i64: 128, 8>}, {pipeline_mode = #tpu.pipeline_mode<synchronous>, transform_indices = @transform_1, window_bounds = array<i64: 8, 128>}, {pipeline_mode = #tpu.pipeline_mode<synchronous>, transform_indices = @transform_2, window_bounds = array<i64: 1, 128>}, {transform_indices = @transform_3, window_bounds = array<i64: 128, 128>}]} {
    %c0 = arith.constant 0 : index
    %c0_0 = arith.constant 0 : index
    %0 = vector.load %arg1[%c0, %c0_0] : memref<128x8xf32, #tpu.memory_space<vmem>>, vector<128x8xf32>
    %1 = vector.extract_strided_slice %0 {offsets = [0, 0], sizes = [128, 1], strides = [1, 1]} : vector<128x8xf32> to vector<128x1xf32>
    %c0_1 = arith.constant 0 : index
    %c0_2 = arith.constant 0 : index
    %2 = vector.load %arg2[%c0_1, %c0_2] : memref<8x128xf32, #tpu.memory_space<vmem>>, vector<1x128xf32>
    %3 = vector.broadcast %1 : vector<128x1xf32> to vector<128x128xf32>
    %4 = vector.broadcast %2 : vector<1x128xf32> to vector<128x128xf32>
    %5 = arith.mulf %3, %4 : vector<128x128xf32>
    %6 = vector.extract_strided_slice %0 {offsets = [0, 1], sizes = [128, 1], strides = [1, 1]} : vector<128x8xf32> to vector<128x1xf32>
    %c1 = arith.constant 1 : index
    %c0_3 = arith.constant 0 : index
    %7 = vector.load %arg2[%c1, %c0_3] : memref<8x128xf32, #tpu.memory_space<vmem>>, vector<1x128xf32>
    %8 = vector.broadcast %6 : vector<128x1xf32> to vector<128x128xf32>
    %9 = vector.broadcast %7 : vector<1x128xf32> to vector<128x128xf32>
    %10 = arith.mulf %8, %9 : vector<128x128xf32>
    %11 = arith.addf %5, %10 : vector<128x128xf32>
    %12 = vector.extract_strided_slice %0 {offsets = [0, 2], sizes = [128, 1], strides = [1, 1]} : vector<128x8xf32> to vector<128x1xf32>
    %c2 = arith.constant 2 : index
    %c0_4 = arith.constant 0 : index
    %13 = vector.load %arg2[%c2, %c0_4] : memref<8x128xf32, #tpu.memory_space<vmem>>, vector<1x128xf32>
    %14 = vector.broadcast %12 : vector<128x1xf32> to vector<128x128xf32>
    %15 = vector.broadcast %13 : vector<1x128xf32> to vector<128x128xf32>
    %16 = arith.mulf %14, %15 : vector<128x128xf32>
    %17 = arith.addf %11, %16 : vector<128x128xf32>
    %18 = vector.extract_strided_slice %0 {offsets = [0, 3], sizes = [128, 1], strides = [1, 1]} : vector<128x8xf32> to vector<128x1xf32>
    %c3 = arith.constant 3 : index
    %c0_5 = arith.constant 0 : index
    %19 = vector.load %arg2[%c3, %c0_5] : memref<8x128xf32, #tpu.memory_space<vmem>>, vector<1x128xf32>
    %20 = vector.broadcast %18 : vector<128x1xf32> to vector<128x128xf32>
    %21 = vector.broadcast %19 : vector<1x128xf32> to vector<128x128xf32>
    %22 = arith.mulf %20, %21 : vector<128x128xf32>
    %23 = arith.addf %17, %22 : vector<128x128xf32>
    %24 = vector.extract_strided_slice %0 {offsets = [0, 4], sizes = [128, 1], strides = [1, 1]} : vector<128x8xf32> to vector<128x1xf32>
    %c4 = arith.constant 4 : index
    %c0_6 = arith.constant 0 : index
    %25 = vector.load %arg2[%c4, %c0_6] : memref<8x128xf32, #tpu.memory_space<vmem>>, vector<1x128xf32>
    %26 = vector.broadcast %24 : vector<128x1xf32> to vector<128x128xf32>
    %27 = vector.broadcast %25 : vector<1x128xf32> to vector<128x128xf32>
    %28 = arith.mulf %26, %27 : vector<128x128xf32>
    %29 = arith.addf %23, %28 : vector<128x128xf32>
    %30 = vector.extract_strided_slice %0 {offsets = [0, 5], sizes = [128, 1], strides = [1, 1]} : vector<128x8xf32> to vector<128x1xf32>
    %c5 = arith.constant 5 : index
    %c0_7 = arith.constant 0 : index
    %31 = vector.load %arg2[%c5, %c0_7] : memref<8x128xf32, #tpu.memory_space<vmem>>, vector<1x128xf32>
    %32 = vector.broadcast %30 : vector<128x1xf32> to vector<128x128xf32>
    %33 = vector.broadcast %31 : vector<1x128xf32> to vector<128x128xf32>
    %34 = arith.mulf %32, %33 : vector<128x128xf32>
    %35 = arith.addf %29, %34 : vector<128x128xf32>
    %36 = vector.extract_strided_slice %0 {offsets = [0, 6], sizes = [128, 1], strides = [1, 1]} : vector<128x8xf32> to vector<128x1xf32>
    %c6 = arith.constant 6 : index
    %c0_8 = arith.constant 0 : index
    %37 = vector.load %arg2[%c6, %c0_8] : memref<8x128xf32, #tpu.memory_space<vmem>>, vector<1x128xf32>
    %38 = vector.broadcast %36 : vector<128x1xf32> to vector<128x128xf32>
    %39 = vector.broadcast %37 : vector<1x128xf32> to vector<128x128xf32>
    %40 = arith.mulf %38, %39 : vector<128x128xf32>
    %41 = arith.addf %35, %40 : vector<128x128xf32>
    %42 = vector.extract_strided_slice %0 {offsets = [0, 7], sizes = [128, 1], strides = [1, 1]} : vector<128x8xf32> to vector<128x1xf32>
    %c7 = arith.constant 7 : index
    %c0_9 = arith.constant 0 : index
    %43 = vector.load %arg2[%c7, %c0_9] : memref<8x128xf32, #tpu.memory_space<vmem>>, vector<1x128xf32>
    %44 = vector.broadcast %42 : vector<128x1xf32> to vector<128x128xf32>
    %45 = vector.broadcast %43 : vector<1x128xf32> to vector<128x128xf32>
    %46 = arith.mulf %44, %45 : vector<128x128xf32>
    %47 = arith.addf %41, %46 : vector<128x128xf32>
    %c0_10 = arith.constant 0 : index
    %c0_11 = arith.constant 0 : index
    %48 = vector.load %arg3[%c0_10, %c0_11] : memref<1x128xf32, #tpu.memory_space<vmem>>, vector<1x128xf32>
    %49 = vector.broadcast %48 : vector<1x128xf32> to vector<128x128xf32>
    %50 = arith.addf %47, %49 : vector<128x128xf32>
    %51 = math.sin %50 : vector<128x128xf32>
    %c0_12 = arith.constant 0 : index
    %c0_13 = arith.constant 0 : index
    %52 = vector.load %arg4[%c0_12, %c0_13] : memref<128x128xf32, #tpu.memory_space<vmem>>, vector<128x128xf32>
    tpu.vector_store %arg4[%c0_12, %c0_13], %51 {strides = array<i32>} : memref<128x128xf32, #tpu.memory_space<vmem>>, vector<128x128xf32>,
    return
  }
  func.func @transform_0(%arg0: i32) -> (i32, i32) {
    %c0_i32 = arith.constant 0 : i32
    %c0_i32_0 = arith.constant 0 : i32
    return %arg0, %c0_i32 : i32, i32
  }
  func.func @transform_1(%arg0: i32) -> (i32, i32) {
    %c0_i32 = arith.constant 0 : i32
    %c0_i32_0 = arith.constant 0 : i32
    %c0_i32_1 = arith.constant 0 : i32
    return %c0_i32, %c0_i32_0 : i32, i32
  }
  func.func @transform_2(%arg0: i32) -> (i32, i32) {
    %c0_i32 = arith.constant 0 : i32
    %c0_i32_0 = arith.constant 0 : i32
    %c0_i32_1 = arith.constant 0 : i32
    return %c0_i32, %c0_i32_0 : i32, i32
  }
  func.func @transform_3(%arg0: i32) -> (i32, i32) {
    %c0_i32 = arith.constant 0 : i32
    %c0_i32_0 = arith.constant 0 : i32
    return %arg0, %c0_i32 : i32, i32
  }
}

</mosaic_0001>

<llo_original>
// kernel: tpu_custom_call.1
$region0: #{tpu_custom_call.1}
  #allocation0 [shape = 'u32[]', space=smem, size = 0x4, offset = 0x4, fixed_abs, tag = 'smem constant byte address 0x4 - core index']
  #allocation1 [shape = 'u32[144,128]{1,0:T(1,128)}', space=vmem, size = 0x12000, scoped, tag = 'internal scratch']
  %s0 = inlined_call_operand.vmem [shape: f32[128,8], index: 0, kind: input, shape index: {}]
  %s1 = inlined_call_operand.vmem [shape: f32[8,128], index: 1, kind: input, shape index: {}]
  %s2 = inlined_call_operand.vmem [shape: f32[1,128], index: 2, kind: input, shape index: {}]
  %s3 = inlined_call_operand.hbm [shape: f32[128,128], index: 3, kind: output, shape index: {}]
  %s4 = sld [smem:[#allocation0]]
  $region22: #{tpu_custom_call.1} parent=0
    _
  %s6 = ssub.s32 1, %s4
  %s7 = scalar_select 0, %s6, %s4
  $region1: #{tpu_custom_call.1} parent=0
    #allocation2 [shape = 'u8[65536]{0}', space=vmem, size = 0x10000, scoped, tag = 'output window, operand 0, single buffered']
    #allocation3 [shape = 's32[1]{0}', space=sflag, size = 0x4, scoped, tag = 'scoped memory for tpu_custom_call.1']
    %8 = vsyncpa [#allocation3], 0
    // Predicated region
    $region2: #{tpu_custom_call.1} parent=1 // pred_check
      _
    $region3: #{tpu_custom_call.1} parent=1 // pred_check_branch
      %10 = sbr.rel (0) target = $region5
    $region4: #{tpu_custom_call.1} parent=1 // pred_region
      _
    $region5: #{tpu_custom_call.1} parent=1 // pred_fallthru
      _
    // Predicated region
    $region6: #{tpu_custom_call.1} parent=1 // pred_check
      _
    $region7: #{tpu_custom_call.1} parent=1 // pred_check_branch
      %12 = sbr.rel (0) target = $region9
    $region8: #{tpu_custom_call.1} parent=1 // pred_region
      _
    $region9: #{tpu_custom_call.1} parent=1 // pred_fallthru
      _
    // Predicated region
    $region10: #{tpu_custom_call.1} parent=1 // pred_check
      _
    $region11: #{tpu_custom_call.1} parent=1 // pred_check_branch
      %14 = sbr.rel (0) target = $region13
    $region12: #{tpu_custom_call.1} parent=1 // pred_region
      _
    $region13: #{tpu_custom_call.1} parent=1 // pred_fallthru
      _
    %v15 = vld [vmem:[%s0] sm:$0xff]
    %v16 = vld [vmem:[%s0 + $0x8] sm:$0xff]
    %v17 = vld [vmem:[%s0 + $0x10] sm:$0xff]
    %v18 = vld [vmem:[%s0 + $0x18] sm:$0xff]
    %v19 = vld [vmem:[%s0 + $0x20] sm:$0xff]
    %v20 = vld [vmem:[%s0 + $0x28] sm:$0xff]
    %v21 = vld [vmem:[%s0 + $0x30] sm:$0xff]
    %v22 = vld [vmem:[%s0 + $0x38] sm:$0xff]
    %v23 = vld [vmem:[%s0 + $0x40] sm:$0xff]
    %v24 = vld [vmem:[%s0 + $0x48] sm:$0xff]
    %v25 = vld [vmem:[%s0 + $0x50] sm:$0xff]
    %v26 = vld [vmem:[%s0 + $0x58] sm:$0xff]
    %v27 = vld [vmem:[%s0 + $0x60] sm:$0xff]
    %v28 = vld [vmem:[%s0 + $0x68] sm:$0xff]
    %v29 = vld [vmem:[%s0 + $0x70] sm:$0xff]
    %v30 = vld [vmem:[%s0 + $0x78] sm:$0xff]
    %v31 = vld [vmem:[%s1] sm:$0x1]
    %33 = vset.pattern.permute.xlu0 0
    %34 = vperm.xlu0 %33, %v15
    %v35 = vpop.permute.xlu0 %34
    %38 = vset.pattern.permute.xlu0 0
    %39 = vperm.xlu0 %38, %v16
    %v40 = vpop.permute.xlu0 %39
    %43 = vset.pattern.permute.xlu0 0
    %44 = vperm.xlu0 %43, %v17
    %v45 = vpop.permute.xlu0 %44
    %48 = vset.pattern.permute.xlu0 0
    %49 = vperm.xlu0 %48, %v18
    %v50 = vpop.permute.xlu0 %49
    %53 = vset.pattern.permute.xlu0 0
    %54 = vperm.xlu0 %53, %v19
    %v55 = vpop.permute.xlu0 %54
    %58 = vset.pattern.permute.xlu0 0
    %59 = vperm.xlu0 %58, %v20
    %v60 = vpop.permute.xlu0 %59
    %63 = vset.pattern.permute.xlu0 0
    %64 = vperm.xlu0 %63, %v21
    %v65 = vpop.permute.xlu0 %64
    %68 = vset.pattern.permute.xlu0 0
    %69 = vperm.xlu0 %68, %v22
    %v70 = vpop.permute.xlu0 %69
    %73 = vset.pattern.permute.xlu0 0
    %74 = vperm.xlu0 %73, %v23
    %v75 = vpop.permute.xlu0 %74
    %78 = vset.pattern.permute.xlu0 0
    %79 = vperm.xlu0 %78, %v24
    %v80 = vpop.permute.xlu0 %79
    %83 = vset.pattern.permute.xlu0 0
    %84 = vperm.xlu0 %83, %v25
    %v85 = vpop.permute.xlu0 %84
    %88 = vset.pattern.permute.xlu0 0
    %89 = vperm.xlu0 %88, %v26
    %v90 = vpop.permute.xlu0 %89
    %93 = vset.pattern.permute.xlu0 0
    %94 = vperm.xlu0 %93, %v27
    %v95 = vpop.permute.xlu0 %94
    %98 = vset.pattern.permute.xlu0 0
    %99 = vperm.xlu0 %98, %v28
    %v100 = vpop.permute.xlu0 %99
    %103 = vset.pattern.permute.xlu0 0
    %104 = vperm.xlu0 %103, %v29
    %v105 = vpop.permute.xlu0 %104
    %108 = vset.pattern.permute.xlu0 0
    %109 = vperm.xlu0 %108, %v30
    %v110 = vpop.permute.xlu0 %109
    %v112 = vlaneseq
    %v113 = vshrl.u32 %v112, 7
    %v114 = vsub.s32 0, %v113
    %v115 = vrot.slane %v31, %v114
    %v116 = vmul.f32 %v35, %v115
    %v117 = vmul.f32 %v40, %v115
    %v118 = vmul.f32 %v45, %v115
    %v119 = vmul.f32 %v50, %v115
    %v120 = vmul.f32 %v55, %v115
    %v121 = vmul.f32 %v60, %v115
    %v122 = vmul.f32 %v65, %v115
    %v123 = vmul.f32 %v70, %v115
    %v124 = vmul.f32 %v75, %v115
    %v125 = vmul.f32 %v80, %v115
    %v126 = vmul.f32 %v85, %v115
    %v127 = vmul.f32 %v90, %v115
    %v128 = vmul.f32 %v95, %v115
    %v129 = vmul.f32 %v100, %v115
    %v130 = vmul.f32 %v105, %v115
    %v131 = vmul.f32 %v110, %v115
    %v132 = vld [vmem:[%s1 + $0x1] sm:$0x1]
    %133 = vset.pattern.permute.xlu0 1
    %134 = vperm.xlu0 %133, %v15
    %v135 = vpop.permute.xlu0 %134
    %137 = vset.pattern.permute.xlu0 1
    %138 = vperm.xlu0 %137, %v16
    %v139 = vpop.permute.xlu0 %138
    %141 = vset.pattern.permute.xlu0 1
    %142 = vperm.xlu0 %141, %v17
    %v143 = vpop.permute.xlu0 %142
    %145 = vset.pattern.permute.xlu0 1
    %146 = vperm.xlu0 %145, %v18
    %v147 = vpop.permute.xlu0 %146
    %149 = vset.pattern.permute.xlu0 1
    %150 = vperm.xlu0 %149, %v19
    %v151 = vpop.permute.xlu0 %150
    %153 = vset.pattern.permute.xlu0 1
    %154 = vperm.xlu0 %153, %v20
    %v155 = vpop.permute.xlu0 %154
    %157 = vset.pattern.permute.xlu0 1
    %158 = vperm.xlu0 %157, %v21
    %v159 = vpop.permute.xlu0 %158
    %161 = vset.pattern.permute.xlu0 1
    %162 = vperm.xlu0 %161, %v22
    %v163 = vpop.permute.xlu0 %162
    %165 = vset.pattern.permute.xlu0 1
    %166 = vperm.xlu0 %165, %v23
    %v167 = vpop.permute.xlu0 %166
    %169 = vset.pattern.permute.xlu0 1
    %170 = vperm.xlu0 %169, %v24
    %v171 = vpop.permute.xlu0 %170
    %173 = vset.pattern.permute.xlu0 1
    %174 = vperm.xlu0 %173, %v25
    %v175 = vpop.permute.xlu0 %174
    %177 = vset.pattern.permute.xlu0 1
    %178 = vperm.xlu0 %177, %v26
    %v179 = vpop.permute.xlu0 %178
    %181 = vset.pattern.permute.xlu0 1
    %182 = vperm.xlu0 %181, %v27
    %v183 = vpop.permute.xlu0 %182
    %185 = vset.pattern.permute.xlu0 1
    %186 = vperm.xlu0 %185, %v28
    %v187 = vpop.permute.xlu0 %186
    %189 = vset.pattern.permute.xlu0 1
    %190 = vperm.xlu0 %189, %v29
    %v191 = vpop.permute.xlu0 %190
    %193 = vset.pattern.permute.xlu0 1
    %194 = vperm.xlu0 %193, %v30
    %v195 = vpop.permute.xlu0 %194
    %v197 = vlaneseq
    %v198 = vshrl.u32 %v197, 7
    %v199 = vsub.s32 0, %v198
    %v200 = vrot.slane %v132, %v199
    %v201 = vmul.f32 %v135, %v200
    %v202 = vmul.f32 %v139, %v200
    %v203 = vmul.f32 %v143, %v200
    %v204 = vmul.f32 %v147, %v200
    %v205 = vmul.f32 %v151, %v200
    %v206 = vmul.f32 %v155, %v200
    %v207 = vmul.f32 %v159, %v200
    %v208 = vmul.f32 %v163, %v200
    %v209 = vmul.f32 %v167, %v200
    %v210 = vmul.f32 %v171, %v200
    %v211 = vmul.f32 %v175, %v200
    %v212 = vmul.f32 %v179, %v200
    %v213 = vmul.f32 %v183, %v200
    %v214 = vmul.f32 %v187, %v200
    %v215 = vmul.f32 %v191, %v200
    %v216 = vmul.f32 %v195, %v200
    %v217 = vadd.f32 %v116, %v201
    %v218 = vadd.f32 %v117, %v202
    %v219 = vadd.f32 %v118, %v203
    %v220 = vadd.f32 %v119, %v204
    %v221 = vadd.f32 %v120, %v205
    %v222 = vadd.f32 %v121, %v206
    %v223 = vadd.f32 %v122, %v207
    %v224 = vadd.f32 %v123, %v208
    %v225 = vadd.f32 %v124, %v209
    %v226 = vadd.f32 %v125, %v210
    %v227 = vadd.f32 %v126, %v211
    %v228 = vadd.f32 %v127, %v212
    %v229 = vadd.f32 %v128, %v213
    %v230 = vadd.f32 %v129, %v214
    %v231 = vadd.f32 %v130, %v215
    %v232 = vadd.f32 %v131, %v216
    %v233 = vld [vmem:[%s1 + $0x2] sm:$0x1]
    %234 = vset.pattern.permute.xlu0 2
    %235 = vperm.xlu0 %234, %v15
    %v236 = vpop.permute.xlu0 %235
    %238 = vset.pattern.permute.xlu0 2
    %239 = vperm.xlu0 %238, %v16
    %v240 = vpop.permute.xlu0 %239
    %242 = vset.pattern.permute.xlu0 2
    %243 = vperm.xlu0 %242, %v17
    %v244 = vpop.permute.xlu0 %243
    %246 = vset.pattern.permute.xlu0 2
    %247 = vperm.xlu0 %246, %v18
    %v248 = vpop.permute.xlu0 %247
    %250 = vset.pattern.permute.xlu0 2
    %251 = vperm.xlu0 %250, %v19
    %v252 = vpop.permute.xlu0 %251
    %254 = vset.pattern.permute.xlu0 2
    %255 = vperm.xlu0 %254, %v20
    %v256 = vpop.permute.xlu0 %255
    %258 = vset.pattern.permute.xlu0 2
    %259 = vperm.xlu0 %258, %v21
    %v260 = vpop.permute.xlu0 %259
    %262 = vset.pattern.permute.xlu0 2
    %263 = vperm.xlu0 %262, %v22
    %v264 = vpop.permute.xlu0 %263
    %266 = vset.pattern.permute.xlu0 2
    %267 = vperm.xlu0 %266, %v23
    %v268 = vpop.permute.xlu0 %267
    %270 = vset.pattern.permute.xlu0 2
    %271 = vperm.xlu0 %270, %v24
    %v272 = vpop.permute.xlu0 %271
    %274 = vset.pattern.permute.xlu0 2
    %275 = vperm.xlu0 %274, %v25
    %v276 = vpop.permute.xlu0 %275
    %278 = vset.pattern.permute.xlu0 2
    %279 = vperm.xlu0 %278, %v26
    %v280 = vpop.permute.xlu0 %279
    %282 = vset.pattern.permute.xlu0 2
    %283 = vperm.xlu0 %282, %v27
    %v284 = vpop.permute.xlu0 %283
    %286 = vset.pattern.permute.xlu0 2
    %287 = vperm.xlu0 %286, %v28
    %v288 = vpop.permute.xlu0 %287
    %290 = vset.pattern.permute.xlu0 2
    %291 = vperm.xlu0 %290, %v29
    %v292 = vpop.permute.xlu0 %291
    %294 = vset.pattern.permute.xlu0 2
    %295 = vperm.xlu0 %294, %v30
    %v296 = vpop.permute.xlu0 %295
    %v298 = vlaneseq
    %v299 = vshrl.u32 %v298, 7
    %v300 = vsub.s32 0, %v299
    %v301 = vrot.slane %v233, %v300
    %v302 = vmul.f32 %v236, %v301
    %v303 = vmul.f32 %v240, %v301
    %v304 = vmul.f32 %v244, %v301
    %v305 = vmul.f32 %v248, %v301
    %v306 = vmul.f32 %v252, %v301
    %v307 = vmul.f32 %v256, %v301
    %v308 = vmul.f32 %v260, %v301
    %v309 = vmul.f32 %v264, %v301
    %v310 = vmul.f32 %v268, %v301
    %v311 = vmul.f32 %v272, %v301
    %v312 = vmul.f32 %v276, %v301
    %v313 = vmul.f32 %v280, %v301
    %v314 = vmul.f32 %v284, %v301
    %v315 = vmul.f32 %v288, %v301
    %v316 = vmul.f32 %v292, %v301
    %v317 = vmul.f32 %v296, %v301
    %v318 = vadd.f32 %v217, %v302
    %v319 = vadd.f32 %v218, %v303
    %v320 = vadd.f32 %v219, %v304
    %v321 = vadd.f32 %v220, %v305
    %v322 = vadd.f32 %v221, %v306
    %v323 = vadd.f32 %v222, %v307
    %v324 = vadd.f32 %v223, %v308
    %v325 = vadd.f32 %v224, %v309
    %v326 = vadd.f32 %v225, %v310
    %v327 = vadd.f32 %v226, %v311
    %v328 = vadd.f32 %v227, %v312
    %v329 = vadd.f32 %v228, %v313
    %v330 = vadd.f32 %v229, %v314
    %v331 = vadd.f32 %v230, %v315
    %v332 = vadd.f32 %v231, %v316
    %v333 = vadd.f32 %v232, %v317
    %v334 = vld [vmem:[%s1 + $0x3] sm:$0x1]
    %335 = vset.pattern.permute.xlu0 3
    %336 = vperm.xlu0 %335, %v15
    %v337 = vpop.permute.xlu0 %336
    %339 = vset.pattern.permute.xlu0 3
    %340 = vperm.xlu0 %339, %v16
    %v341 = vpop.permute.xlu0 %340
    %343 = vset.pattern.permute.xlu0 3
    %344 = vperm.xlu0 %343, %v17
    %v345 = vpop.permute.xlu0 %344
    %347 = vset.pattern.permute.xlu0 3
    %348 = vperm.xlu0 %347, %v18
    %v349 = vpop.permute.xlu0 %348
    %351 = vset.pattern.permute.xlu0 3
    %352 = vperm.xlu0 %351, %v19
    %v353 = vpop.permute.xlu0 %352
    %355 = vset.pattern.permute.xlu0 3
    %356 = vperm.xlu0 %355, %v20
    %v357 = vpop.permute.xlu0 %356
    %359 = vset.pattern.permute.xlu0 3
    %360 = vperm.xlu0 %359, %v21
    %v361 = vpop.permute.xlu0 %360
    %363 = vset.pattern.permute.xlu0 3
    %364 = vperm.xlu0 %363, %v22
    %v365 = vpop.permute.xlu0 %364
    %367 = vset.pattern.permute.xlu0 3
    %368 = vperm.xlu0 %367, %v23
    %v369 = vpop.permute.xlu0 %368
    %371 = vset.pattern.permute.xlu0 3
    %372 = vperm.xlu0 %371, %v24
    %v373 = vpop.permute.xlu0 %372
    %375 = vset.pattern.permute.xlu0 3
    %376 = vperm.xlu0 %375, %v25
    %v377 = vpop.permute.xlu0 %376
    %379 = vset.pattern.permute.xlu0 3
    %380 = vperm.xlu0 %379, %v26
    %v381 = vpop.permute.xlu0 %380
    %383 = vset.pattern.permute.xlu0 3
    %384 = vperm.xlu0 %383, %v27
    %v385 = vpop.permute.xlu0 %384
    %387 = vset.pattern.permute.xlu0 3
    %388 = vperm.xlu0 %387, %v28
    %v389 = vpop.permute.xlu0 %388
    %391 = vset.pattern.permute.xlu0 3
    %392 = vperm.xlu0 %391, %v29
    %v393 = vpop.permute.xlu0 %392
    %395 = vset.pattern.permute.xlu0 3
    %396 = vperm.xlu0 %395, %v30
    %v397 = vpop.permute.xlu0 %396
    %v399 = vlaneseq
    %v400 = vshrl.u32 %v399, 7
    %v401 = vsub.s32 0, %v400
    %v402 = vrot.slane %v334, %v401
    %v403 = vmul.f32 %v337, %v402
    %v404 = vmul.f32 %v341, %v402
    %v405 = vmul.f32 %v345, %v402
    %v406 = vmul.f32 %v349, %v402
    %v407 = vmul.f32 %v353, %v402
    %v408 = vmul.f32 %v357, %v402
    %v409 = vmul.f32 %v361, %v402
    %v410 = vmul.f32 %v365, %v402
    %v411 = vmul.f32 %v369, %v402
    %v412 = vmul.f32 %v373, %v402
    %v413 = vmul.f32 %v377, %v402
    %v414 = vmul.f32 %v381, %v402
    %v415 = vmul.f32 %v385, %v402
    %v416 = vmul.f32 %v389, %v402
    %v417 = vmul.f32 %v393, %v402
    %v418 = vmul.f32 %v397, %v402
    %v419 = vadd.f32 %v318, %v403
    %v420 = vadd.f32 %v319, %v404
    %v421 = vadd.f32 %v320, %v405
    %v422 = vadd.f32 %v321, %v406
    %v423 = vadd.f32 %v322, %v407
    %v424 = vadd.f32 %v323, %v408
    %v425 = vadd.f32 %v324, %v409
    %v426 = vadd.f32 %v325, %v410
    %v427 = vadd.f32 %v326, %v411
    %v428 = vadd.f32 %v327, %v412
    %v429 = vadd.f32 %v328, %v413
    %v430 = vadd.f32 %v329, %v414
    %v431 = vadd.f32 %v330, %v415
    %v432 = vadd.f32 %v331, %v416
    %v433 = vadd.f32 %v332, %v417
    %v434 = vadd.f32 %v333, %v418
    %v435 = vld [vmem:[%s1 + $0x4] sm:$0x1]
    %436 = vset.pattern.permute.xlu0 4
    %437 = vperm.xlu0 %436, %v15
    %v438 = vpop.permute.xlu0 %437
    %440 = vset.pattern.permute.xlu0 4
    %441 = vperm.xlu0 %440, %v16
    %v442 = vpop.permute.xlu0 %441
    %444 = vset.pattern.permute.xlu0 4
    %445 = vperm.xlu0 %444, %v17
    %v446 = vpop.permute.xlu0 %445
    %448 = vset.pattern.permute.xlu0 4
    %449 = vperm.xlu0 %448, %v18
    %v450 = vpop.permute.xlu0 %449
    %452 = vset.pattern.permute.xlu0 4
    %453 = vperm.xlu0 %452, %v19
    %v454 = vpop.permute.xlu0 %453
    %456 = vset.pattern.permute.xlu0 4
    %457 = vperm.xlu0 %456, %v20
    %v458 = vpop.permute.xlu0 %457
    %460 = vset.pattern.permute.xlu0 4
    %461 = vperm.xlu0 %460, %v21
    %v462 = vpop.permute.xlu0 %461
    %464 = vset.pattern.permute.xlu0 4
    %465 = vperm.xlu0 %464, %v22
    %v466 = vpop.permute.xlu0 %465
    %468 = vset.pattern.permute.xlu0 4
    %469 = vperm.xlu0 %468, %v23
    %v470 = vpop.permute.xlu0 %469
    %472 = vset.pattern.permute.xlu0 4
    %473 = vperm.xlu0 %472, %v24
    %v474 = vpop.permute.xlu0 %473
    %476 = vset.pattern.permute.xlu0 4
    %477 = vperm.xlu0 %476, %v25
    %v478 = vpop.permute.xlu0 %477
    %480 = vset.pattern.permute.xlu0 4
    %481 = vperm.xlu0 %480, %v26
    %v482 = vpop.permute.xlu0 %481
    %484 = vset.pattern.permute.xlu0 4
    %485 = vperm.xlu0 %484, %v27
    %v486 = vpop.permute.xlu0 %485
    %488 = vset.pattern.permute.xlu0 4
    %489 = vperm.xlu0 %488, %v28
    %v490 = vpop.permute.xlu0 %489
    %492 = vset.pattern.permute.xlu0 4
    %493 = vperm.xlu0 %492, %v29
    %v494 = vpop.permute.xlu0 %493
    %496 = vset.pattern.permute.xlu0 4
    %497 = vperm.xlu0 %496, %v30
    %v498 = vpop.permute.xlu0 %497
    %v500 = vlaneseq
    %v501 = vshrl.u32 %v500, 7
    %v502 = vsub.s32 0, %v501
    %v503 = vrot.slane %v435, %v502
    %v504 = vmul.f32 %v438, %v503
    %v505 = vmul.f32 %v442, %v503
    %v506 = vmul.f32 %v446, %v503
    %v507 = vmul.f32 %v450, %v503
    %v508 = vmul.f32 %v454, %v503
    %v509 = vmul.f32 %v458, %v503
    %v510 = vmul.f32 %v462, %v503
    %v511 = vmul.f32 %v466, %v503
    %v512 = vmul.f32 %v470, %v503
    %v513 = vmul.f32 %v474, %v503
    %v514 = vmul.f32 %v478, %v503
    %v515 = vmul.f32 %v482, %v503
    %v516 = vmul.f32 %v486, %v503
    %v517 = vmul.f32 %v490, %v503
    %v518 = vmul.f32 %v494, %v503
    %v519 = vmul.f32 %v498, %v503
    %v520 = vadd.f32 %v419, %v504
    %v521 = vadd.f32 %v420, %v505
    %v522 = vadd.f32 %v421, %v506
    %v523 = vadd.f32 %v422, %v507
    %v524 = vadd.f32 %v423, %v508
    %v525 = vadd.f32 %v424, %v509
    %v526 = vadd.f32 %v425, %v510
    %v527 = vadd.f32 %v426, %v511
    %v528 = vadd.f32 %v427, %v512
    %v529 = vadd.f32 %v428, %v513
    %v530 = vadd.f32 %v429, %v514
    %v531 = vadd.f32 %v430, %v515
    %v532 = vadd.f32 %v431, %v516
    %v533 = vadd.f32 %v432, %v517
    %v534 = vadd.f32 %v433, %v518
    %v535 = vadd.f32 %v434, %v519
    %v536 = vld [vmem:[%s1 + $0x5] sm:$0x1]
    %537 = vset.pattern.permute.xlu0 5
    %538 = vperm.xlu0 %537, %v15
    %v539 = vpop.permute.xlu0 %538
    %541 = vset.pattern.permute.xlu0 5
    %542 = vperm.xlu0 %541, %v16
    %v543 = vpop.permute.xlu0 %542
    %545 = vset.pattern.permute.xlu0 5
    %546 = vperm.xlu0 %545, %v17
    %v547 = vpop.permute.xlu0 %546
    %549 = vset.pattern.permute.xlu0 5
    %550 = vperm.xlu0 %549, %v18
    %v551 = vpop.permute.xlu0 %550
    %553 = vset.pattern.permute.xlu0 5
    %554 = vperm.xlu0 %553, %v19
    %v555 = vpop.permute.xlu0 %554
    %557 = vset.pattern.permute.xlu0 5
    %558 = vperm.xlu0 %557, %v20
    %v559 = vpop.permute.xlu0 %558
    %561 = vset.pattern.permute.xlu0 5
    %562 = vperm.xlu0 %561, %v21
    %v563 = vpop.permute.xlu0 %562
    %565 = vset.pattern.permute.xlu0 5
    %566 = vperm.xlu0 %565, %v22
    %v567 = vpop.permute.xlu0 %566
    %569 = vset.pattern.permute.xlu0 5
    %570 = vperm.xlu0 %569, %v23
    %v571 = vpop.permute.xlu0 %570
    %573 = vset.pattern.permute.xlu0 5
    %574 = vperm.xlu0 %573, %v24
    %v575 = vpop.permute.xlu0 %574
    %577 = vset.pattern.permute.xlu0 5
    %578 = vperm.xlu0 %577, %v25
    %v579 = vpop.permute.xlu0 %578
    %581 = vset.pattern.permute.xlu0 5
    %582 = vperm.xlu0 %581, %v26
    %v583 = vpop.permute.xlu0 %582
    %585 = vset.pattern.permute.xlu0 5
    %586 = vperm.xlu0 %585, %v27
    %v587 = vpop.permute.xlu0 %586
    %589 = vset.pattern.permute.xlu0 5
    %590 = vperm.xlu0 %589, %v28
    %v591 = vpop.permute.xlu0 %590
    %593 = vset.pattern.permute.xlu0 5
    %594 = vperm.xlu0 %593, %v29
    %v595 = vpop.permute.xlu0 %594
    %597 = vset.pattern.permute.xlu0 5
    %598 = vperm.xlu0 %597, %v30
    %v599 = vpop.permute.xlu0 %598
    %v601 = vlaneseq
    %v602 = vshrl.u32 %v601, 7
    %v603 = vsub.s32 0, %v602
    %v604 = vrot.slane %v536, %v603
    %v605 = vmul.f32 %v539, %v604
    %v606 = vmul.f32 %v543, %v604
    %v607 = vmul.f32 %v547, %v604
    %v608 = vmul.f32 %v551, %v604
    %v609 = vmul.f32 %v555, %v604
    %v610 = vmul.f32 %v559, %v604
    %v611 = vmul.f32 %v563, %v604
    %v612 = vmul.f32 %v567, %v604
    %v613 = vmul.f32 %v571, %v604
    %v614 = vmul.f32 %v575, %v604
    %v615 = vmul.f32 %v579, %v604
    %v616 = vmul.f32 %v583, %v604
    %v617 = vmul.f32 %v587, %v604
    %v618 = vmul.f32 %v591, %v604
    %v619 = vmul.f32 %v595, %v604
    %v620 = vmul.f32 %v599, %v604
    %v621 = vadd.f32 %v520, %v605
    %v622 = vadd.f32 %v521, %v606
    %v623 = vadd.f32 %v522, %v607
    %v624 = vadd.f32 %v523, %v608
    %v625 = vadd.f32 %v524, %v609
    %v626 = vadd.f32 %v525, %v610
    %v627 = vadd.f32 %v526, %v611
    %v628 = vadd.f32 %v527, %v612
    %v629 = vadd.f32 %v528, %v613
    %v630 = vadd.f32 %v529, %v614
    %v631 = vadd.f32 %v530, %v615
    %v632 = vadd.f32 %v531, %v616
    %v633 = vadd.f32 %v532, %v617
    %v634 = vadd.f32 %v533, %v618
    %v635 = vadd.f32 %v534, %v619
    %v636 = vadd.f32 %v535, %v620
    %v637 = vld [vmem:[%s1 + $0x6] sm:$0x1]
    %638 = vset.pattern.permute.xlu0 6
    %639 = vperm.xlu0 %638, %v15
    %v640 = vpop.permute.xlu0 %639
    %642 = vset.pattern.permute.xlu0 6
    %643 = vperm.xlu0 %642, %v16
    %v644 = vpop.permute.xlu0 %643
    %646 = vset.pattern.permute.xlu0 6
    %647 = vperm.xlu0 %646, %v17
    %v648 = vpop.permute.xlu0 %647
    %650 = vset.pattern.permute.xlu0 6
    %651 = vperm.xlu0 %650, %v18
    %v652 = vpop.permute.xlu0 %651
    %654 = vset.pattern.permute.xlu0 6
    %655 = vperm.xlu0 %654, %v19
    %v656 = vpop.permute.xlu0 %655
    %658 = vset.pattern.permute.xlu0 6
    %659 = vperm.xlu0 %658, %v20
    %v660 = vpop.permute.xlu0 %659
    %662 = vset.pattern.permute.xlu0 6
    %663 = vperm.xlu0 %662, %v21
    %v664 = vpop.permute.xlu0 %663
    %666 = vset.pattern.permute.xlu0 6
    %667 = vperm.xlu0 %666, %v22
    %v668 = vpop.permute.xlu0 %667
    %670 = vset.pattern.permute.xlu0 6
    %671 = vperm.xlu0 %670, %v23
    %v672 = vpop.permute.xlu0 %671
    %674 = vset.pattern.permute.xlu0 6
    %675 = vperm.xlu0 %674, %v24
    %v676 = vpop.permute.xlu0 %675
    %678 = vset.pattern.permute.xlu0 6
    %679 = vperm.xlu0 %678, %v25
    %v680 = vpop.permute.xlu0 %679
    %682 = vset.pattern.permute.xlu0 6
    %683 = vperm.xlu0 %682, %v26
    %v684 = vpop.permute.xlu0 %683
    %686 = vset.pattern.permute.xlu0 6
    %687 = vperm.xlu0 %686, %v27
    %v688 = vpop.permute.xlu0 %687
    %690 = vset.pattern.permute.xlu0 6
    %691 = vperm.xlu0 %690, %v28
    %v692 = vpop.permute.xlu0 %691
    %694 = vset.pattern.permute.xlu0 6
    %695 = vperm.xlu0 %694, %v29
    %v696 = vpop.permute.xlu0 %695
    %698 = vset.pattern.permute.xlu0 6
    %699 = vperm.xlu0 %698, %v30
    %v700 = vpop.permute.xlu0 %699
    %v702 = vlaneseq
    %v703 = vshrl.u32 %v702, 7
    %v704 = vsub.s32 0, %v703
    %v705 = vrot.slane %v637, %v704
    %v706 = vmul.f32 %v640, %v705
    %v707 = vmul.f32 %v644, %v705
    %v708 = vmul.f32 %v648, %v705
    %v709 = vmul.f32 %v652, %v705
    %v710 = vmul.f32 %v656, %v705
    %v711 = vmul.f32 %v660, %v705
    %v712 = vmul.f32 %v664, %v705
    %v713 = vmul.f32 %v668, %v705
    %v714 = vmul.f32 %v672, %v705
    %v715 = vmul.f32 %v676, %v705
    %v716 = vmul.f32 %v680, %v705
    %v717 = vmul.f32 %v684, %v705
    %v718 = vmul.f32 %v688, %v705
    %v719 = vmul.f32 %v692, %v705
    %v720 = vmul.f32 %v696, %v705
    %v721 = vmul.f32 %v700, %v705
    %v722 = vadd.f32 %v621, %v706
    %v723 = vadd.f32 %v622, %v707
    %v724 = vadd.f32 %v623, %v708
    %v725 = vadd.f32 %v624, %v709
    %v726 = vadd.f32 %v625, %v710
    %v727 = vadd.f32 %v626, %v711
    %v728 = vadd.f32 %v627, %v712
    %v729 = vadd.f32 %v628, %v713
    %v730 = vadd.f32 %v629, %v714
    %v731 = vadd.f32 %v630, %v715
    %v732 = vadd.f32 %v631, %v716
    %v733 = vadd.f32 %v632, %v717
    %v734 = vadd.f32 %v633, %v718
    %v735 = vadd.f32 %v634, %v719
    %v736 = vadd.f32 %v635, %v720
    %v737 = vadd.f32 %v636, %v721
    %v738 = vld [vmem:[%s1 + $0x7] sm:$0x1]
    %739 = vset.pattern.permute.xlu0 7
    %740 = vperm.xlu0 %739, %v15
    %v741 = vpop.permute.xlu0 %740
    %743 = vset.pattern.permute.xlu0 7
    %744 = vperm.xlu0 %743, %v16
    %v745 = vpop.permute.xlu0 %744
    %747 = vset.pattern.permute.xlu0 7
    %748 = vperm.xlu0 %747, %v17
    %v749 = vpop.permute.xlu0 %748
    %751 = vset.pattern.permute.xlu0 7
    %752 = vperm.xlu0 %751, %v18
    %v753 = vpop.permute.xlu0 %752
    %755 = vset.pattern.permute.xlu0 7
    %756 = vperm.xlu0 %755, %v19
    %v757 = vpop.permute.xlu0 %756
    %759 = vset.pattern.permute.xlu0 7
    %760 = vperm.xlu0 %759, %v20
    %v761 = vpop.permute.xlu0 %760
    %763 = vset.pattern.permute.xlu0 7
    %764 = vperm.xlu0 %763, %v21
    %v765 = vpop.permute.xlu0 %764
    %767 = vset.pattern.permute.xlu0 7
    %768 = vperm.xlu0 %767, %v22
    %v769 = vpop.permute.xlu0 %768
    %771 = vset.pattern.permute.xlu0 7
    %772 = vperm.xlu0 %771, %v23
    %v773 = vpop.permute.xlu0 %772
    %775 = vset.pattern.permute.xlu0 7
    %776 = vperm.xlu0 %775, %v24
    %v777 = vpop.permute.xlu0 %776
    %779 = vset.pattern.permute.xlu0 7
    %780 = vperm.xlu0 %779, %v25
    %v781 = vpop.permute.xlu0 %780
    %783 = vset.pattern.permute.xlu0 7
    %784 = vperm.xlu0 %783, %v26
    %v785 = vpop.permute.xlu0 %784
    %787 = vset.pattern.permute.xlu0 7
    %788 = vperm.xlu0 %787, %v27
    %v789 = vpop.permute.xlu0 %788
    %791 = vset.pattern.permute.xlu0 7
    %792 = vperm.xlu0 %791, %v28
    %v793 = vpop.permute.xlu0 %792
    %795 = vset.pattern.permute.xlu0 7
    %796 = vperm.xlu0 %795, %v29
    %v797 = vpop.permute.xlu0 %796
    %799 = vset.pattern.permute.xlu0 7
    %800 = vperm.xlu0 %799, %v30
    %v801 = vpop.permute.xlu0 %800
    %v803 = vlaneseq
    %v804 = vshrl.u32 %v803, 7
    %v805 = vsub.s32 0, %v804
    %v806 = vrot.slane %v738, %v805
    %v807 = vmul.f32 %v741, %v806
    %v808 = vmul.f32 %v745, %v806
    %v809 = vmul.f32 %v749, %v806
    %v810 = vmul.f32 %v753, %v806
    %v811 = vmul.f32 %v757, %v806
    %v812 = vmul.f32 %v761, %v806
    %v813 = vmul.f32 %v765, %v806
    %v814 = vmul.f32 %v769, %v806
    %v815 = vmul.f32 %v773, %v806
    %v816 = vmul.f32 %v777, %v806
    %v817 = vmul.f32 %v781, %v806
    %v818 = vmul.f32 %v785, %v806
    %v819 = vmul.f32 %v789, %v806
    %v820 = vmul.f32 %v793, %v806
    %v821 = vmul.f32 %v797, %v806
    %v822 = vmul.f32 %v801, %v806
    %v823 = vadd.f32 %v722, %v807
    %v824 = vadd.f32 %v723, %v808
    %v825 = vadd.f32 %v724, %v809
    %v826 = vadd.f32 %v725, %v810
    %v827 = vadd.f32 %v726, %v811
    %v828 = vadd.f32 %v727, %v812
    %v829 = vadd.f32 %v728, %v813
    %v830 = vadd.f32 %v729, %v814
    %v831 = vadd.f32 %v730, %v815
    %v832 = vadd.f32 %v731, %v816
    %v833 = vadd.f32 %v732, %v817
    %v834 = vadd.f32 %v733, %v818
    %v835 = vadd.f32 %v734, %v819
    %v836 = vadd.f32 %v735, %v820
    %v837 = vadd.f32 %v736, %v821
    %v838 = vadd.f32 %v737, %v822
    %v839 = vld [vmem:[%s2] sm:$0x1]
    %v841 = vlaneseq
    %v842 = vshrl.u32 %v841, 7
    %v843 = vsub.s32 0, %v842
    %v844 = vrot.slane %v839, %v843
    %v846 = vadd.f32 %v823, %v844
    %v847 = vadd.f32 %v824, %v844
    %v848 = vadd.f32 %v825, %v844
    %v849 = vadd.f32 %v826, %v844
    %v850 = vadd.f32 %v827, %v844
    %v851 = vadd.f32 %v828, %v844
    %v852 = vadd.f32 %v829, %v844
    %v853 = vadd.f32 %v830, %v844
    %v854 = vadd.f32 %v831, %v844
    %v855 = vadd.f32 %v832, %v844
    %v856 = vadd.f32 %v833, %v844
    %v857 = vadd.f32 %v834, %v844
    %v858 = vadd.f32 %v835, %v844
    %v859 = vadd.f32 %v836, %v844
    %v860 = vadd.f32 %v837, %v844
    %v861 = vadd.f32 %v838, %v844
    %v862 = vand.u32 2147483647, %v846
    %vm863 = vcmp.le.f32.partialorder %v862, 0.7853982
    %vm864 = vcmp.lt.s32.totalorder %v846, 0
    %v865 = vand.u32 %v846, 2139095040
    %v866 = vshrl.u32 %v865, 23
    %v867 = vsub.s32 %v866, 127
    %v868 = vand.u32 2147483647, %v846
    %v869 = vand.u32 %v868, 8388607
    %v870 = vor.u32 %v869, 8388608
    %v871 = vsub.s32 0, %v870
    %v872 = vadd.s32 %v867, 1
    %vm873 = vcmp.gt.s32.totalorder %v872, 0
    %v874 = vsel %vm873, %v872, 0
    %v875 = vshrl.u32 %v874, 5
    %v876 = vand.u32 %v874, 31
    %v877 = vsub.s32 32, %v876
    %v878 = vshrl.u32 683565275, %v877
    %v879 = vshll.u32 683565275, %v876
    %v880 = vshrl.u32 2475754826, %v877
    %v881 = vor.u32 %v879, %v880
    %v882 = vshll.u32 2475754826, %v876
    %v883 = vshrl.u32 2131351028, %v877
    %v884 = vor.u32 %v882, %v883
    %v885 = vshll.u32 2131351028, %v876
    %v886 = vshrl.u32 2102212464, %v877
    %v887 = vor.u32 %v885, %v886
    %v888 = vshll.u32 2102212464, %v876
    %v889 = vshrl.u32 920167782, %v877
    %v890 = vor.u32 %v888, %v889
    %v891 = vshll.u32 920167782, %v876
    %v892 = vshrl.u32 1326507024, %v877
    %v893 = vor.u32 %v891, %v892
    %vm894 = vcmp.lt.s32.totalorder %v875, 1
    %vm895 = vcmp.lt.s32.totalorder %v875, 2
    %vm896 = vcmp.lt.s32.totalorder %v875, 3
    %vm897 = vcmp.lt.s32.totalorder %v875, 4
    %v898 = vsel %vm894, %v878, %v881
    %v899 = vsel %vm897, %v887, 2102212464
    %v900 = vsel %vm896, %v884, %v899
    %v901 = vsel %vm895, %v898, %v900
    %v902 = vsel %vm894, %v881, %v884
    %v903 = vsel %vm897, %v890, 920167782
    %v904 = vsel %vm896, %v887, %v903
    %v905 = vsel %vm895, %v902, %v904
    %v906 = vsel %vm894, %v884, %v887
    %v907 = vsel %vm897, %v893, 1326507024
    %v908 = vsel %vm896, %v890, %v907
    %v909 = vsel %vm895, %v906, %v908
    %v910 = vshll.u32 %v870, 8
    %v911 = vmul.u32.u64.compose %v910, %v909
    %v912 = vextract.low.u32 %v911
    %v913 = vextract.high.u32 %v911
    %v914 = vmul.u32.u64.compose %v910, %v905
    %v915 = vextract.low.u32 %v914
    %v916 = vextract.high.u32 %v914
    %v917 = vmul.u32 %v910, %v901
    %v918 = vadd.s32 %v913, %v915
    %vm919 = vc.u32 %v913, %v915
    %v920 = vadd.s32 %v916, 1
    %v921 = vsel %vm919, %v920, %v916
    %v922 = vadd.s32 %v917, %v921
    %v923 = vadd.s32 %v922, 536870912
    %v924 = vshrl.u32 %v923, 30
    %v925 = vshll.u32 %v924, 30
    %v926 = vsub.s32 %v922, %v925
    %vm927 = vcmp.lt.s32.totalorder %v926, 0
    %v928 = vsub.s32 0, %v926
    %v929 = vsel %vm927, %v928, %v926
    %v930 = vclz %v929
    %v931 = vsub.s32 %v930, 2
    %vm932 = vcmp.gt.s32.totalorder 0, %v931
    %v933 = vsel %vm932, 0, %v931
    %v934 = vsub.s32 32, %v933
    %v935 = vshll.u32 %v926, %v933
    %v936 = vshrl.u32 %v918, %v934
    %v937 = vor.u32 %v935, %v936
    %v938 = vsub.s32 4294967266, %v933
    %v939 = vadd.s32 %v938, 127
    %v940 = vshll.u32 %v939, 23
    %v941 = vor.u32 4788187, %v940
    %v942 = vand.u32 2147483647, %v941
    %v944 = vcvt.s32.f32 %v937
    %v945 = vmul.f32 %v944, %v942
    %v946 = vxor.u32 %v945, 2147483648
    %v947 = vsel %vm864, %v946, %v945
    %v948 = vsub.s32 4, %v924
    %v949 = vsel %vm864, %v948, %v924
    %v950 = vsel %vm863, %v846, %v947
    %v951 = vsel %vm863, 0, %v949
    %v952 = vcosq.f32.pop %v950
    %v953 = vsinq.f32.pop %v950
    %vm954 = vweird.f32 %v846
    %v955 = vadd.s32 %v951, 3
    %v956 = vand.u32 %v955, 3
    %vm957 = vcmp.lt.s32.totalorder %v956, 2
    %vm958 = vcmp.eq.s32.totalorder %v956, 0
    %v959 = vxor.u32 %v953, 2147483648
    %v960 = vsel %vm958, %v952, %v959
    %vm961 = vcmp.eq.s32.totalorder %v956, 2
    %v962 = vxor.u32 %v952, 2147483648
    %v963 = vsel %vm961, %v962, %v953
    %v964 = vsel %vm957, %v960, %v963
    %v965 = vsel %vm954, nan, %v964
    %v966 = vand.u32 2147483647, %v847
    %vm967 = vcmp.le.f32.partialorder %v966, 0.7853982
    %vm968 = vcmp.lt.s32.totalorder %v847, 0
    %v969 = vand.u32 %v847, 2139095040
    %v970 = vshrl.u32 %v969, 23
    %v971 = vsub.s32 %v970, 127
    %v972 = vand.u32 2147483647, %v847
    %v973 = vand.u32 %v972, 8388607
    %v974 = vor.u32 %v973, 8388608
    %v975 = vsub.s32 0, %v974
    %v976 = vadd.s32 %v971, 1
    %vm977 = vcmp.gt.s32.totalorder %v976, 0
    %v978 = vsel %vm977, %v976, 0
    %v979 = vshrl.u32 %v978, 5
    %v980 = vand.u32 %v978, 31
    %v981 = vsub.s32 32, %v980
    %v982 = vshrl.u32 683565275, %v981
    %v983 = vshll.u32 683565275, %v980
    %v984 = vshrl.u32 2475754826, %v981
    %v985 = vor.u32 %v983, %v984
    %v986 = vshll.u32 2475754826, %v980
    %v987 = vshrl.u32 2131351028, %v981
    %v988 = vor.u32 %v986, %v987
    %v989 = vshll.u32 2131351028, %v980
    %v990 = vshrl.u32 2102212464, %v981
    %v991 = vor.u32 %v989, %v990
    %v992 = vshll.u32 2102212464, %v980
    %v993 = vshrl.u32 920167782, %v981
    %v994 = vor.u32 %v992, %v993
    %v995 = vshll.u32 920167782, %v980
    %v996 = vshrl.u32 1326507024, %v981
    %v997 = vor.u32 %v995, %v996
    %vm998 = vcmp.lt.s32.totalorder %v979, 1
    %vm999 = vcmp.lt.s32.totalorder %v979, 2
    %vm1000 = vcmp.lt.s32.totalorder %v979, 3
    %vm1001 = vcmp.lt.s32.totalorder %v979, 4
    %v1002 = vsel %vm998, %v982, %v985
    %v1003 = vsel %vm1001, %v991, 2102212464
    %v1004 = vsel %vm1000, %v988, %v1003
    %v1005 = vsel %vm999, %v1002, %v1004
    %v1006 = vsel %vm998, %v985, %v988
    %v1007 = vsel %vm1001, %v994, 920167782
    %v1008 = vsel %vm1000, %v991, %v1007
    %v1009 = vsel %vm999, %v1006, %v1008
    %v1010 = vsel %vm998, %v988, %v991
    %v1011 = vsel %vm1001, %v997, 1326507024
    %v1012 = vsel %vm1000, %v994, %v1011
    %v1013 = vsel %vm999, %v1010, %v1012
    %v1014 = vshll.u32 %v974, 8
    %v1015 = vmul.u32.u64.compose %v1014, %v1013
    %v1016 = vextract.low.u32 %v1015
    %v1017 = vextract.high.u32 %v1015
    %v1018 = vmul.u32.u64.compose %v1014, %v1009
    %v1019 = vextract.low.u32 %v1018
    %v1020 = vextract.high.u32 %v1018
    %v1021 = vmul.u32 %v1014, %v1005
    %v1022 = vadd.s32 %v1017, %v1019
    %vm1023 = vc.u32 %v1017, %v1019
    %v1024 = vadd.s32 %v1020, 1
    %v1025 = vsel %vm1023, %v1024, %v1020
    %v1026 = vadd.s32 %v1021, %v1025
    %v1027 = vadd.s32 %v1026, 536870912
    %v1028 = vshrl.u32 %v1027, 30
    %v1029 = vshll.u32 %v1028, 30
    %v1030 = vsub.s32 %v1026, %v1029
    %vm1031 = vcmp.lt.s32.totalorder %v1030, 0
    %v1032 = vsub.s32 0, %v1030
    %v1033 = vsel %vm1031, %v1032, %v1030
    %v1034 = vclz %v1033
    %v1035 = vsub.s32 %v1034, 2
    %vm1036 = vcmp.gt.s32.totalorder 0, %v1035
    %v1037 = vsel %vm1036, 0, %v1035
    %v1038 = vsub.s32 32, %v1037
    %v1039 = vshll.u32 %v1030, %v1037
    %v1040 = vshrl.u32 %v1022, %v1038
    %v1041 = vor.u32 %v1039, %v1040
    %v1042 = vsub.s32 4294967266, %v1037
    %v1043 = vadd.s32 %v1042, 127
    %v1044 = vshll.u32 %v1043, 23
    %v1045 = vor.u32 4788187, %v1044
    %v1046 = vand.u32 2147483647, %v1045
    %v1048 = vcvt.s32.f32 %v1041
    %v1049 = vmul.f32 %v1048, %v1046
    %v1050 = vxor.u32 %v1049, 2147483648
    %v1051 = vsel %vm968, %v1050, %v1049
    %v1052 = vsub.s32 4, %v1028
    %v1053 = vsel %vm968, %v1052, %v1028
    %v1054 = vsel %vm967, %v847, %v1051
    %v1055 = vsel %vm967, 0, %v1053
    %v1056 = vcosq.f32.pop %v1054
    %v1057 = vsinq.f32.pop %v1054
    %vm1058 = vweird.f32 %v847
    %v1059 = vadd.s32 %v1055, 3
    %v1060 = vand.u32 %v1059, 3
    %vm1061 = vcmp.lt.s32.totalorder %v1060, 2
    %vm1062 = vcmp.eq.s32.totalorder %v1060, 0
    %v1063 = vxor.u32 %v1057, 2147483648
    %v1064 = vsel %vm1062, %v1056, %v1063
    %vm1065 = vcmp.eq.s32.totalorder %v1060, 2
    %v1066 = vxor.u32 %v1056, 2147483648
    %v1067 = vsel %vm1065, %v1066, %v1057
    %v1068 = vsel %vm1061, %v1064, %v1067
    %v1069 = vsel %vm1058, nan, %v1068
    %v1070 = vand.u32 2147483647, %v848
    %vm1071 = vcmp.le.f32.partialorder %v1070, 0.7853982
    %vm1072 = vcmp.lt.s32.totalorder %v848, 0
    %v1073 = vand.u32 %v848, 2139095040
    %v1074 = vshrl.u32 %v1073, 23
    %v1075 = vsub.s32 %v1074, 127
    %v1076 = vand.u32 2147483647, %v848
    %v1077 = vand.u32 %v1076, 8388607
    %v1078 = vor.u32 %v1077, 8388608
    %v1079 = vsub.s32 0, %v1078
    %v1080 = vadd.s32 %v1075, 1
    %vm1081 = vcmp.gt.s32.totalorder %v1080, 0
    %v1082 = vsel %vm1081, %v1080, 0
    %v1083 = vshrl.u32 %v1082, 5
    %v1084 = vand.u32 %v1082, 31
    %v1085 = vsub.s32 32, %v1084
    %v1086 = vshrl.u32 683565275, %v1085
    %v1087 = vshll.u32 683565275, %v1084
    %v1088 = vshrl.u32 2475754826, %v1085
    %v1089 = vor.u32 %v1087, %v1088
    %v1090 = vshll.u32 2475754826, %v1084
    %v1091 = vshrl.u32 2131351028, %v1085
    %v1092 = vor.u32 %v1090, %v1091
    %v1093 = vshll.u32 2131351028, %v1084
    %v1094 = vshrl.u32 2102212464, %v1085
    %v1095 = vor.u32 %v1093, %v1094
    %v1096 = vshll.u32 2102212464, %v1084
    %v1097 = vshrl.u32 920167782, %v1085
    %v1098 = vor.u32 %v1096, %v1097
    %v1099 = vshll.u32 920167782, %v1084
    %v1100 = vshrl.u32 1326507024, %v1085
    %v1101 = vor.u32 %v1099, %v1100
    %vm1102 = vcmp.lt.s32.totalorder %v1083, 1
    %vm1103 = vcmp.lt.s32.totalorder %v1083, 2
    %vm1104 = vcmp.lt.s32.totalorder %v1083, 3
    %vm1105 = vcmp.lt.s32.totalorder %v1083, 4
    %v1106 = vsel %vm1102, %v1086, %v1089
    %v1107 = vsel %vm1105, %v1095, 2102212464
    %v1108 = vsel %vm1104, %v1092, %v1107
    %v1109 = vsel %vm1103, %v1106, %v1108
    %v1110 = vsel %vm1102, %v1089, %v1092
    %v1111 = vsel %vm1105, %v1098, 920167782
    %v1112 = vsel %vm1104, %v1095, %v1111
    %v1113 = vsel %vm1103, %v1110, %v1112
    %v1114 = vsel %vm1102, %v1092, %v1095
    %v1115 = vsel %vm1105, %v1101, 1326507024
    %v1116 = vsel %vm1104, %v1098, %v1115
    %v1117 = vsel %vm1103, %v1114, %v1116
    %v1118 = vshll.u32 %v1078, 8
    %v1119 = vmul.u32.u64.compose %v1118, %v1117
    %v1120 = vextract.low.u32 %v1119
    %v1121 = vextract.high.u32 %v1119
    %v1122 = vmul.u32.u64.compose %v1118, %v1113
    %v1123 = vextract.low.u32 %v1122
    %v1124 = vextract.high.u32 %v1122
    %v1125 = vmul.u32 %v1118, %v1109
    %v1126 = vadd.s32 %v1121, %v1123
    %vm1127 = vc.u32 %v1121, %v1123
    %v1128 = vadd.s32 %v1124, 1
    %v1129 = vsel %vm1127, %v1128, %v1124
    %v1130 = vadd.s32 %v1125, %v1129
    %v1131 = vadd.s32 %v1130, 536870912
    %v1132 = vshrl.u32 %v1131, 30
    %v1133 = vshll.u32 %v1132, 30
    %v1134 = vsub.s32 %v1130, %v1133
    %vm1135 = vcmp.lt.s32.totalorder %v1134, 0
    %v1136 = vsub.s32 0, %v1134
    %v1137 = vsel %vm1135, %v1136, %v1134
    %v1138 = vclz %v1137
    %v1139 = vsub.s32 %v1138, 2
    %vm1140 = vcmp.gt.s32.totalorder 0, %v1139
    %v1141 = vsel %vm1140, 0, %v1139
    %v1142 = vsub.s32 32, %v1141
    %v1143 = vshll.u32 %v1134, %v1141
    %v1144 = vshrl.u32 %v1126, %v1142
    %v1145 = vor.u32 %v1143, %v1144
    %v1146 = vsub.s32 4294967266, %v1141
    %v1147 = vadd.s32 %v1146, 127
    %v1148 = vshll.u32 %v1147, 23
    %v1149 = vor.u32 4788187, %v1148
    %v1150 = vand.u32 2147483647, %v1149
    %v1152 = vcvt.s32.f32 %v1145
    %v1153 = vmul.f32 %v1152, %v1150
    %v1154 = vxor.u32 %v1153, 2147483648
    %v1155 = vsel %vm1072, %v1154, %v1153
    %v1156 = vsub.s32 4, %v1132
    %v1157 = vsel %vm1072, %v1156, %v1132
    %v1158 = vsel %vm1071, %v848, %v1155
    %v1159 = vsel %vm1071, 0, %v1157
    %v1160 = vcosq.f32.pop %v1158
    %v1161 = vsinq.f32.pop %v1158
    %vm1162 = vweird.f32 %v848
    %v1163 = vadd.s32 %v1159, 3
    %v1164 = vand.u32 %v1163, 3
    %vm1165 = vcmp.lt.s32.totalorder %v1164, 2
    %vm1166 = vcmp.eq.s32.totalorder %v1164, 0
    %v1167 = vxor.u32 %v1161, 2147483648
    %v1168 = vsel %vm1166, %v1160, %v1167
    %vm1169 = vcmp.eq.s32.totalorder %v1164, 2
    %v1170 = vxor.u32 %v1160, 2147483648
    %v1171 = vsel %vm1169, %v1170, %v1161
    %v1172 = vsel %vm1165, %v1168, %v1171
    %v1173 = vsel %vm1162, nan, %v1172
    %v1174 = vand.u32 2147483647, %v849
    %vm1175 = vcmp.le.f32.partialorder %v1174, 0.7853982
    %vm1176 = vcmp.lt.s32.totalorder %v849, 0
    %v1177 = vand.u32 %v849, 2139095040
    %v1178 = vshrl.u32 %v1177, 23
    %v1179 = vsub.s32 %v1178, 127
    %v1180 = vand.u32 2147483647, %v849
    %v1181 = vand.u32 %v1180, 8388607
    %v1182 = vor.u32 %v1181, 8388608
    %v1183 = vsub.s32 0, %v1182
    %v1184 = vadd.s32 %v1179, 1
    %vm1185 = vcmp.gt.s32.totalorder %v1184, 0
    %v1186 = vsel %vm1185, %v1184, 0
    %v1187 = vshrl.u32 %v1186, 5
    %v1188 = vand.u32 %v1186, 31
    %v1189 = vsub.s32 32, %v1188
    %v1190 = vshrl.u32 683565275, %v1189
    %v1191 = vshll.u32 683565275, %v1188
    %v1192 = vshrl.u32 2475754826, %v1189
    %v1193 = vor.u32 %v1191, %v1192
    %v1194 = vshll.u32 2475754826, %v1188
    %v1195 = vshrl.u32 2131351028, %v1189
    %v1196 = vor.u32 %v1194, %v1195
    %v1197 = vshll.u32 2131351028, %v1188
    %v1198 = vshrl.u32 2102212464, %v1189
    %v1199 = vor.u32 %v1197, %v1198
    %v1200 = vshll.u32 2102212464, %v1188
    %v1201 = vshrl.u32 920167782, %v1189
    %v1202 = vor.u32 %v1200, %v1201
    %v1203 = vshll.u32 920167782, %v1188
    %v1204 = vshrl.u32 1326507024, %v1189
    %v1205 = vor.u32 %v1203, %v1204
    %vm1206 = vcmp.lt.s32.totalorder %v1187, 1
    %vm1207 = vcmp.lt.s32.totalorder %v1187, 2
    %vm1208 = vcmp.lt.s32.totalorder %v1187, 3
    %vm1209 = vcmp.lt.s32.totalorder %v1187, 4
    %v1210 = vsel %vm1206, %v1190, %v1193
    %v1211 = vsel %vm1209, %v1199, 2102212464
    %v1212 = vsel %vm1208, %v1196, %v1211
    %v1213 = vsel %vm1207, %v1210, %v1212
    %v1214 = vsel %vm1206, %v1193, %v1196
    %v1215 = vsel %vm1209, %v1202, 920167782
    %v1216 = vsel %vm1208, %v1199, %v1215
    %v1217 = vsel %vm1207, %v1214, %v1216
    %v1218 = vsel %vm1206, %v1196, %v1199
    %v1219 = vsel %vm1209, %v1205, 1326507024
    %v1220 = vsel %vm1208, %v1202, %v1219
    %v1221 = vsel %vm1207, %v1218, %v1220
    %v1222 = vshll.u32 %v1182, 8
    %v1223 = vmul.u32.u64.compose %v1222, %v1221
    %v1224 = vextract.low.u32 %v1223
    %v1225 = vextract.high.u32 %v1223
    %v1226 = vmul.u32.u64.compose %v1222, %v1217
    %v1227 = vextract.low.u32 %v1226
    %v1228 = vextract.high.u32 %v1226
    %v1229 = vmul.u32 %v1222, %v1213
    %v1230 = vadd.s32 %v1225, %v1227
    %vm1231 = vc.u32 %v1225, %v1227
    %v1232 = vadd.s32 %v1228, 1
    %v1233 = vsel %vm1231, %v1232, %v1228
    %v1234 = vadd.s32 %v1229, %v1233
    %v1235 = vadd.s32 %v1234, 536870912
    %v1236 = vshrl.u32 %v1235, 30
    %v1237 = vshll.u32 %v1236, 30
    %v1238 = vsub.s32 %v1234, %v1237
    %vm1239 = vcmp.lt.s32.totalorder %v1238, 0
    %v1240 = vsub.s32 0, %v1238
    %v1241 = vsel %vm1239, %v1240, %v1238
    %v1242 = vclz %v1241
    %v1243 = vsub.s32 %v1242, 2
    %vm1244 = vcmp.gt.s32.totalorder 0, %v1243
    %v1245 = vsel %vm1244, 0, %v1243
    %v1246 = vsub.s32 32, %v1245
    %v1247 = vshll.u32 %v1238, %v1245
    %v1248 = vshrl.u32 %v1230, %v1246
    %v1249 = vor.u32 %v1247, %v1248
    %v1250 = vsub.s32 4294967266, %v1245
    %v1251 = vadd.s32 %v1250, 127
    %v1252 = vshll.u32 %v1251, 23
    %v1253 = vor.u32 4788187, %v1252
    %v1254 = vand.u32 2147483647, %v1253
    %v1256 = vcvt.s32.f32 %v1249
    %v1257 = vmul.f32 %v1256, %v1254
    %v1258 = vxor.u32 %v1257, 2147483648
    %v1259 = vsel %vm1176, %v1258, %v1257
    %v1260 = vsub.s32 4, %v1236
    %v1261 = vsel %vm1176, %v1260, %v1236
    %v1262 = vsel %vm1175, %v849, %v1259
    %v1263 = vsel %vm1175, 0, %v1261
    %v1264 = vcosq.f32.pop %v1262
    %v1265 = vsinq.f32.pop %v1262
    %vm1266 = vweird.f32 %v849
    %v1267 = vadd.s32 %v1263, 3
    %v1268 = vand.u32 %v1267, 3
    %vm1269 = vcmp.lt.s32.totalorder %v1268, 2
    %vm1270 = vcmp.eq.s32.totalorder %v1268, 0
    %v1271 = vxor.u32 %v1265, 2147483648
    %v1272 = vsel %vm1270, %v1264, %v1271
    %vm1273 = vcmp.eq.s32.totalorder %v1268, 2
    %v1274 = vxor.u32 %v1264, 2147483648
    %v1275 = vsel %vm1273, %v1274, %v1265
    %v1276 = vsel %vm1269, %v1272, %v1275
    %v1277 = vsel %vm1266, nan, %v1276
    %v1278 = vand.u32 2147483647, %v850
    %vm1279 = vcmp.le.f32.partialorder %v1278, 0.7853982
    %vm1280 = vcmp.lt.s32.totalorder %v850, 0
    %v1281 = vand.u32 %v850, 2139095040
    %v1282 = vshrl.u32 %v1281, 23
    %v1283 = vsub.s32 %v1282, 127
    %v1284 = vand.u32 2147483647, %v850
    %v1285 = vand.u32 %v1284, 8388607
    %v1286 = vor.u32 %v1285, 8388608
    %v1287 = vsub.s32 0, %v1286
    %v1288 = vadd.s32 %v1283, 1
    %vm1289 = vcmp.gt.s32.totalorder %v1288, 0
    %v1290 = vsel %vm1289, %v1288, 0
    %v1291 = vshrl.u32 %v1290, 5
    %v1292 = vand.u32 %v1290, 31
    %v1293 = vsub.s32 32, %v1292
    %v1294 = vshrl.u32 683565275, %v1293
    %v1295 = vshll.u32 683565275, %v1292
    %v1296 = vshrl.u32 2475754826, %v1293
    %v1297 = vor.u32 %v1295, %v1296
    %v1298 = vshll.u32 2475754826, %v1292
    %v1299 = vshrl.u32 2131351028, %v1293
    %v1300 = vor.u32 %v1298, %v1299
    %v1301 = vshll.u32 2131351028, %v1292
    %v1302 = vshrl.u32 2102212464, %v1293
    %v1303 = vor.u32 %v1301, %v1302
    %v1304 = vshll.u32 2102212464, %v1292
    %v1305 = vshrl.u32 920167782, %v1293
    %v1306 = vor.u32 %v1304, %v1305
    %v1307 = vshll.u32 920167782, %v1292
    %v1308 = vshrl.u32 1326507024, %v1293
    %v1309 = vor.u32 %v1307, %v1308
    %vm1310 = vcmp.lt.s32.totalorder %v1291, 1
    %vm1311 = vcmp.lt.s32.totalorder %v1291, 2
    %vm1312 = vcmp.lt.s32.totalorder %v1291, 3
    %vm1313 = vcmp.lt.s32.totalorder %v1291, 4
    %v1314 = vsel %vm1310, %v1294, %v1297
    %v1315 = vsel %vm1313, %v1303, 2102212464
    %v1316 = vsel %vm1312, %v1300, %v1315
    %v1317 = vsel %vm1311, %v1314, %v1316
    %v1318 = vsel %vm1310, %v1297, %v1300
    %v1319 = vsel %vm1313, %v1306, 920167782
    %v1320 = vsel %vm1312, %v1303, %v1319
    %v1321 = vsel %vm1311, %v1318, %v1320
    %v1322 = vsel %vm1310, %v1300, %v1303
    %v1323 = vsel %vm1313, %v1309, 1326507024
    %v1324 = vsel %vm1312, %v1306, %v1323
    %v1325 = vsel %vm1311, %v1322, %v1324
    %v1326 = vshll.u32 %v1286, 8
    %v1327 = vmul.u32.u64.compose %v1326, %v1325
    %v1328 = vextract.low.u32 %v1327
    %v1329 = vextract.high.u32 %v1327
    %v1330 = vmul.u32.u64.compose %v1326, %v1321
    %v1331 = vextract.low.u32 %v1330
    %v1332 = vextract.high.u32 %v1330
    %v1333 = vmul.u32 %v1326, %v1317
    %v1334 = vadd.s32 %v1329, %v1331
    %vm1335 = vc.u32 %v1329, %v1331
    %v1336 = vadd.s32 %v1332, 1
    %v1337 = vsel %vm1335, %v1336, %v1332
    %v1338 = vadd.s32 %v1333, %v1337
    %v1339 = vadd.s32 %v1338, 536870912
    %v1340 = vshrl.u32 %v1339, 30
    %v1341 = vshll.u32 %v1340, 30
    %v1342 = vsub.s32 %v1338, %v1341
    %vm1343 = vcmp.lt.s32.totalorder %v1342, 0
    %v1344 = vsub.s32 0, %v1342
    %v1345 = vsel %vm1343, %v1344, %v1342
    %v1346 = vclz %v1345
    %v1347 = vsub.s32 %v1346, 2
    %vm1348 = vcmp.gt.s32.totalorder 0, %v1347
    %v1349 = vsel %vm1348, 0, %v1347
    %v1350 = vsub.s32 32, %v1349
    %v1351 = vshll.u32 %v1342, %v1349
    %v1352 = vshrl.u32 %v1334, %v1350
    %v1353 = vor.u32 %v1351, %v1352
    %v1354 = vsub.s32 4294967266, %v1349
    %v1355 = vadd.s32 %v1354, 127
    %v1356 = vshll.u32 %v1355, 23
    %v1357 = vor.u32 4788187, %v1356
    %v1358 = vand.u32 2147483647, %v1357
    %v1360 = vcvt.s32.f32 %v1353
    %v1361 = vmul.f32 %v1360, %v1358
    %v1362 = vxor.u32 %v1361, 2147483648
    %v1363 = vsel %vm1280, %v1362, %v1361
    %v1364 = vsub.s32 4, %v1340
    %v1365 = vsel %vm1280, %v1364, %v1340
    %v1366 = vsel %vm1279, %v850, %v1363
    %v1367 = vsel %vm1279, 0, %v1365
    %v1368 = vcosq.f32.pop %v1366
    %v1369 = vsinq.f32.pop %v1366
    %vm1370 = vweird.f32 %v850
    %v1371 = vadd.s32 %v1367, 3
    %v1372 = vand.u32 %v1371, 3
    %vm1373 = vcmp.lt.s32.totalorder %v1372, 2
    %vm1374 = vcmp.eq.s32.totalorder %v1372, 0
    %v1375 = vxor.u32 %v1369, 2147483648
    %v1376 = vsel %vm1374, %v1368, %v1375
    %vm1377 = vcmp.eq.s32.totalorder %v1372, 2
    %v1378 = vxor.u32 %v1368, 2147483648
    %v1379 = vsel %vm1377, %v1378, %v1369
    %v1380 = vsel %vm1373, %v1376, %v1379
    %v1381 = vsel %vm1370, nan, %v1380
    %v1382 = vand.u32 2147483647, %v851
    %vm1383 = vcmp.le.f32.partialorder %v1382, 0.7853982
    %vm1384 = vcmp.lt.s32.totalorder %v851, 0
    %v1385 = vand.u32 %v851, 2139095040
    %v1386 = vshrl.u32 %v1385, 23
    %v1387 = vsub.s32 %v1386, 127
    %v1388 = vand.u32 2147483647, %v851
    %v1389 = vand.u32 %v1388, 8388607
    %v1390 = vor.u32 %v1389, 8388608
    %v1391 = vsub.s32 0, %v1390
    %v1392 = vadd.s32 %v1387, 1
    %vm1393 = vcmp.gt.s32.totalorder %v1392, 0
    %v1394 = vsel %vm1393, %v1392, 0
    %v1395 = vshrl.u32 %v1394, 5
    %v1396 = vand.u32 %v1394, 31
    %v1397 = vsub.s32 32, %v1396
    %v1398 = vshrl.u32 683565275, %v1397
    %v1399 = vshll.u32 683565275, %v1396
    %v1400 = vshrl.u32 2475754826, %v1397
    %v1401 = vor.u32 %v1399, %v1400
    %v1402 = vshll.u32 2475754826, %v1396
    %v1403 = vshrl.u32 2131351028, %v1397
    %v1404 = vor.u32 %v1402, %v1403
    %v1405 = vshll.u32 2131351028, %v1396
    %v1406 = vshrl.u32 2102212464, %v1397
    %v1407 = vor.u32 %v1405, %v1406
    %v1408 = vshll.u32 2102212464, %v1396
    %v1409 = vshrl.u32 920167782, %v1397
    %v1410 = vor.u32 %v1408, %v1409
    %v1411 = vshll.u32 920167782, %v1396
    %v1412 = vshrl.u32 1326507024, %v1397
    %v1413 = vor.u32 %v1411, %v1412
    %vm1414 = vcmp.lt.s32.totalorder %v1395, 1
    %vm1415 = vcmp.lt.s32.totalorder %v1395, 2
    %vm1416 = vcmp.lt.s32.totalorder %v1395, 3
    %vm1417 = vcmp.lt.s32.totalorder %v1395, 4
    %v1418 = vsel %vm1414, %v1398, %v1401
    %v1419 = vsel %vm1417, %v1407, 2102212464
    %v1420 = vsel %vm1416, %v1404, %v1419
    %v1421 = vsel %vm1415, %v1418, %v1420
    %v1422 = vsel %vm1414, %v1401, %v1404
    %v1423 = vsel %vm1417, %v1410, 920167782
    %v1424 = vsel %vm1416, %v1407, %v1423
    %v1425 = vsel %vm1415, %v1422, %v1424
    %v1426 = vsel %vm1414, %v1404, %v1407
    %v1427 = vsel %vm1417, %v1413, 1326507024
    %v1428 = vsel %vm1416, %v1410, %v1427
    %v1429 = vsel %vm1415, %v1426, %v1428
    %v1430 = vshll.u32 %v1390, 8
    %v1431 = vmul.u32.u64.compose %v1430, %v1429
    %v1432 = vextract.low.u32 %v1431
    %v1433 = vextract.high.u32 %v1431
    %v1434 = vmul.u32.u64.compose %v1430, %v1425
    %v1435 = vextract.low.u32 %v1434
    %v1436 = vextract.high.u32 %v1434
    %v1437 = vmul.u32 %v1430, %v1421
    %v1438 = vadd.s32 %v1433, %v1435
    %vm1439 = vc.u32 %v1433, %v1435
    %v1440 = vadd.s32 %v1436, 1
    %v1441 = vsel %vm1439, %v1440, %v1436
    %v1442 = vadd.s32 %v1437, %v1441
    %v1443 = vadd.s32 %v1442, 536870912
    %v1444 = vshrl.u32 %v1443, 30
    %v1445 = vshll.u32 %v1444, 30
    %v1446 = vsub.s32 %v1442, %v1445
    %vm1447 = vcmp.lt.s32.totalorder %v1446, 0
    %v1448 = vsub.s32 0, %v1446
    %v1449 = vsel %vm1447, %v1448, %v1446
    %v1450 = vclz %v1449
    %v1451 = vsub.s32 %v1450, 2
    %vm1452 = vcmp.gt.s32.totalorder 0, %v1451
    %v1453 = vsel %vm1452, 0, %v1451
    %v1454 = vsub.s32 32, %v1453
    %v1455 = vshll.u32 %v1446, %v1453
    %v1456 = vshrl.u32 %v1438, %v1454
    %v1457 = vor.u32 %v1455, %v1456
    %v1458 = vsub.s32 4294967266, %v1453
    %v1459 = vadd.s32 %v1458, 127
    %v1460 = vshll.u32 %v1459, 23
    %v1461 = vor.u32 4788187, %v1460
    %v1462 = vand.u32 2147483647, %v1461
    %v1464 = vcvt.s32.f32 %v1457
    %v1465 = vmul.f32 %v1464, %v1462
    %v1466 = vxor.u32 %v1465, 2147483648
    %v1467 = vsel %vm1384, %v1466, %v1465
    %v1468 = vsub.s32 4, %v1444
    %v1469 = vsel %vm1384, %v1468, %v1444
    %v1470 = vsel %vm1383, %v851, %v1467
    %v1471 = vsel %vm1383, 0, %v1469
    %v1472 = vcosq.f32.pop %v1470
    %v1473 = vsinq.f32.pop %v1470
    %vm1474 = vweird.f32 %v851
    %v1475 = vadd.s32 %v1471, 3
    %v1476 = vand.u32 %v1475, 3
    %vm1477 = vcmp.lt.s32.totalorder %v1476, 2
    %vm1478 = vcmp.eq.s32.totalorder %v1476, 0
    %v1479 = vxor.u32 %v1473, 2147483648
    %v1480 = vsel %vm1478, %v1472, %v1479
    %vm1481 = vcmp.eq.s32.totalorder %v1476, 2
    %v1482 = vxor.u32 %v1472, 2147483648
    %v1483 = vsel %vm1481, %v1482, %v1473
    %v1484 = vsel %vm1477, %v1480, %v1483
    %v1485 = vsel %vm1474, nan, %v1484
    %v1486 = vand.u32 2147483647, %v852
    %vm1487 = vcmp.le.f32.partialorder %v1486, 0.7853982
    %vm1488 = vcmp.lt.s32.totalorder %v852, 0
    %v1489 = vand.u32 %v852, 2139095040
    %v1490 = vshrl.u32 %v1489, 23
    %v1491 = vsub.s32 %v1490, 127
    %v1492 = vand.u32 2147483647, %v852
    %v1493 = vand.u32 %v1492, 8388607
    %v1494 = vor.u32 %v1493, 8388608
    %v1495 = vsub.s32 0, %v1494
    %v1496 = vadd.s32 %v1491, 1
    %vm1497 = vcmp.gt.s32.totalorder %v1496, 0
    %v1498 = vsel %vm1497, %v1496, 0
    %v1499 = vshrl.u32 %v1498, 5
    %v1500 = vand.u32 %v1498, 31
    %v1501 = vsub.s32 32, %v1500
    %v1502 = vshrl.u32 683565275, %v1501
    %v1503 = vshll.u32 683565275, %v1500
    %v1504 = vshrl.u32 2475754826, %v1501
    %v1505 = vor.u32 %v1503, %v1504
    %v1506 = vshll.u32 2475754826, %v1500
    %v1507 = vshrl.u32 2131351028, %v1501
    %v1508 = vor.u32 %v1506, %v1507
    %v1509 = vshll.u32 2131351028, %v1500
    %v1510 = vshrl.u32 2102212464, %v1501
    %v1511 = vor.u32 %v1509, %v1510
    %v1512 = vshll.u32 2102212464, %v1500
    %v1513 = vshrl.u32 920167782, %v1501
    %v1514 = vor.u32 %v1512, %v1513
    %v1515 = vshll.u32 920167782, %v1500
    %v1516 = vshrl.u32 1326507024, %v1501
    %v1517 = vor.u32 %v1515, %v1516
    %vm1518 = vcmp.lt.s32.totalorder %v1499, 1
    %vm1519 = vcmp.lt.s32.totalorder %v1499, 2
    %vm1520 = vcmp.lt.s32.totalorder %v1499, 3
    %vm1521 = vcmp.lt.s32.totalorder %v1499, 4
    %v1522 = vsel %vm1518, %v1502, %v1505
    %v1523 = vsel %vm1521, %v1511, 2102212464
    %v1524 = vsel %vm1520, %v1508, %v1523
    %v1525 = vsel %vm1519, %v1522, %v1524
    %v1526 = vsel %vm1518, %v1505, %v1508
    %v1527 = vsel %vm1521, %v1514, 920167782
    %v1528 = vsel %vm1520, %v1511, %v1527
    %v1529 = vsel %vm1519, %v1526, %v1528
    %v1530 = vsel %vm1518, %v1508, %v1511
    %v1531 = vsel %vm1521, %v1517, 1326507024
    %v1532 = vsel %vm1520, %v1514, %v1531
    %v1533 = vsel %vm1519, %v1530, %v1532
    %v1534 = vshll.u32 %v1494, 8
    %v1535 = vmul.u32.u64.compose %v1534, %v1533
    %v1536 = vextract.low.u32 %v1535
    %v1537 = vextract.high.u32 %v1535
    %v1538 = vmul.u32.u64.compose %v1534, %v1529
    %v1539 = vextract.low.u32 %v1538
    %v1540 = vextract.high.u32 %v1538
    %v1541 = vmul.u32 %v1534, %v1525
    %v1542 = vadd.s32 %v1537, %v1539
    %vm1543 = vc.u32 %v1537, %v1539
    %v1544 = vadd.s32 %v1540, 1
    %v1545 = vsel %vm1543, %v1544, %v1540
    %v1546 = vadd.s32 %v1541, %v1545
    %v1547 = vadd.s32 %v1546, 536870912
    %v1548 = vshrl.u32 %v1547, 30
    %v1549 = vshll.u32 %v1548, 30
    %v1550 = vsub.s32 %v1546, %v1549
    %vm1551 = vcmp.lt.s32.totalorder %v1550, 0
    %v1552 = vsub.s32 0, %v1550
    %v1553 = vsel %vm1551, %v1552, %v1550
    %v1554 = vclz %v1553
    %v1555 = vsub.s32 %v1554, 2
    %vm1556 = vcmp.gt.s32.totalorder 0, %v1555
    %v1557 = vsel %vm1556, 0, %v1555
    %v1558 = vsub.s32 32, %v1557
    %v1559 = vshll.u32 %v1550, %v1557
    %v1560 = vshrl.u32 %v1542, %v1558
    %v1561 = vor.u32 %v1559, %v1560
    %v1562 = vsub.s32 4294967266, %v1557
    %v1563 = vadd.s32 %v1562, 127
    %v1564 = vshll.u32 %v1563, 23
    %v1565 = vor.u32 4788187, %v1564
    %v1566 = vand.u32 2147483647, %v1565
    %v1568 = vcvt.s32.f32 %v1561
    %v1569 = vmul.f32 %v1568, %v1566
    %v1570 = vxor.u32 %v1569, 2147483648
    %v1571 = vsel %vm1488, %v1570, %v1569
    %v1572 = vsub.s32 4, %v1548
    %v1573 = vsel %vm1488, %v1572, %v1548
    %v1574 = vsel %vm1487, %v852, %v1571
    %v1575 = vsel %vm1487, 0, %v1573
    %v1576 = vcosq.f32.pop %v1574
    %v1577 = vsinq.f32.pop %v1574
    %vm1578 = vweird.f32 %v852
    %v1579 = vadd.s32 %v1575, 3
    %v1580 = vand.u32 %v1579, 3
    %vm1581 = vcmp.lt.s32.totalorder %v1580, 2
    %vm1582 = vcmp.eq.s32.totalorder %v1580, 0
    %v1583 = vxor.u32 %v1577, 2147483648
    %v1584 = vsel %vm1582, %v1576, %v1583
    %vm1585 = vcmp.eq.s32.totalorder %v1580, 2
    %v1586 = vxor.u32 %v1576, 2147483648
    %v1587 = vsel %vm1585, %v1586, %v1577
    %v1588 = vsel %vm1581, %v1584, %v1587
    %v1589 = vsel %vm1578, nan, %v1588
    %v1590 = vand.u32 2147483647, %v853
    %vm1591 = vcmp.le.f32.partialorder %v1590, 0.7853982
    %vm1592 = vcmp.lt.s32.totalorder %v853, 0
    %v1593 = vand.u32 %v853, 2139095040
    %v1594 = vshrl.u32 %v1593, 23
    %v1595 = vsub.s32 %v1594, 127
    %v1596 = vand.u32 2147483647, %v853
    %v1597 = vand.u32 %v1596, 8388607
    %v1598 = vor.u32 %v1597, 8388608
    %v1599 = vsub.s32 0, %v1598
    %v1600 = vadd.s32 %v1595, 1
    %vm1601 = vcmp.gt.s32.totalorder %v1600, 0
    %v1602 = vsel %vm1601, %v1600, 0
    %v1603 = vshrl.u32 %v1602, 5
    %v1604 = vand.u32 %v1602, 31
    %v1605 = vsub.s32 32, %v1604
    %v1606 = vshrl.u32 683565275, %v1605
    %v1607 = vshll.u32 683565275, %v1604
    %v1608 = vshrl.u32 2475754826, %v1605
    %v1609 = vor.u32 %v1607, %v1608
    %v1610 = vshll.u32 2475754826, %v1604
    %v1611 = vshrl.u32 2131351028, %v1605
    %v1612 = vor.u32 %v1610, %v1611
    %v1613 = vshll.u32 2131351028, %v1604
    %v1614 = vshrl.u32 2102212464, %v1605
    %v1615 = vor.u32 %v1613, %v1614
    %v1616 = vshll.u32 2102212464, %v1604
    %v1617 = vshrl.u32 920167782, %v1605
    %v1618 = vor.u32 %v1616, %v1617
    %v1619 = vshll.u32 920167782, %v1604
    %v1620 = vshrl.u32 1326507024, %v1605
    %v1621 = vor.u32 %v1619, %v1620
    %vm1622 = vcmp.lt.s32.totalorder %v1603, 1
    %vm1623 = vcmp.lt.s32.totalorder %v1603, 2
    %vm1624 = vcmp.lt.s32.totalorder %v1603, 3
    %vm1625 = vcmp.lt.s32.totalorder %v1603, 4
    %v1626 = vsel %vm1622, %v1606, %v1609
    %v1627 = vsel %vm1625, %v1615, 2102212464
    %v1628 = vsel %vm1624, %v1612, %v1627
    %v1629 = vsel %vm1623, %v1626, %v1628
    %v1630 = vsel %vm1622, %v1609, %v1612
    %v1631 = vsel %vm1625, %v1618, 920167782
    %v1632 = vsel %vm1624, %v1615, %v1631
    %v1633 = vsel %vm1623, %v1630, %v1632
    %v1634 = vsel %vm1622, %v1612, %v1615
    %v1635 = vsel %vm1625, %v1621, 1326507024
    %v1636 = vsel %vm1624, %v1618, %v1635
    %v1637 = vsel %vm1623, %v1634, %v1636
    %v1638 = vshll.u32 %v1598, 8
    %v1639 = vmul.u32.u64.compose %v1638, %v1637
    %v1640 = vextract.low.u32 %v1639
    %v1641 = vextract.high.u32 %v1639
    %v1642 = vmul.u32.u64.compose %v1638, %v1633
    %v1643 = vextract.low.u32 %v1642
    %v1644 = vextract.high.u32 %v1642
    %v1645 = vmul.u32 %v1638, %v1629
    %v1646 = vadd.s32 %v1641, %v1643
    %vm1647 = vc.u32 %v1641, %v1643
    %v1648 = vadd.s32 %v1644, 1
    %v1649 = vsel %vm1647, %v1648, %v1644
    %v1650 = vadd.s32 %v1645, %v1649
    %v1651 = vadd.s32 %v1650, 536870912
    %v1652 = vshrl.u32 %v1651, 30
    %v1653 = vshll.u32 %v1652, 30
    %v1654 = vsub.s32 %v1650, %v1653
    %vm1655 = vcmp.lt.s32.totalorder %v1654, 0
    %v1656 = vsub.s32 0, %v1654
    %v1657 = vsel %vm1655, %v1656, %v1654
    %v1658 = vclz %v1657
    %v1659 = vsub.s32 %v1658, 2
    %vm1660 = vcmp.gt.s32.totalorder 0, %v1659
    %v1661 = vsel %vm1660, 0, %v1659
    %v1662 = vsub.s32 32, %v1661
    %v1663 = vshll.u32 %v1654, %v1661
    %v1664 = vshrl.u32 %v1646, %v1662
    %v1665 = vor.u32 %v1663, %v1664
    %v1666 = vsub.s32 4294967266, %v1661
    %v1667 = vadd.s32 %v1666, 127
    %v1668 = vshll.u32 %v1667, 23
    %v1669 = vor.u32 4788187, %v1668
    %v1670 = vand.u32 2147483647, %v1669
    %v1672 = vcvt.s32.f32 %v1665
    %v1673 = vmul.f32 %v1672, %v1670
    %v1674 = vxor.u32 %v1673, 2147483648
    %v1675 = vsel %vm1592, %v1674, %v1673
    %v1676 = vsub.s32 4, %v1652
    %v1677 = vsel %vm1592, %v1676, %v1652
    %v1678 = vsel %vm1591, %v853, %v1675
    %v1679 = vsel %vm1591, 0, %v1677
    %v1680 = vcosq.f32.pop %v1678
    %v1681 = vsinq.f32.pop %v1678
    %vm1682 = vweird.f32 %v853
    %v1683 = vadd.s32 %v1679, 3
    %v1684 = vand.u32 %v1683, 3
    %vm1685 = vcmp.lt.s32.totalorder %v1684, 2
    %vm1686 = vcmp.eq.s32.totalorder %v1684, 0
    %v1687 = vxor.u32 %v1681, 2147483648
    %v1688 = vsel %vm1686, %v1680, %v1687
    %vm1689 = vcmp.eq.s32.totalorder %v1684, 2
    %v1690 = vxor.u32 %v1680, 2147483648
    %v1691 = vsel %vm1689, %v1690, %v1681
    %v1692 = vsel %vm1685, %v1688, %v1691
    %v1693 = vsel %vm1682, nan, %v1692
    %v1694 = vand.u32 2147483647, %v854
    %vm1695 = vcmp.le.f32.partialorder %v1694, 0.7853982
    %vm1696 = vcmp.lt.s32.totalorder %v854, 0
    %v1697 = vand.u32 %v854, 2139095040
    %v1698 = vshrl.u32 %v1697, 23
    %v1699 = vsub.s32 %v1698, 127
    %v1700 = vand.u32 2147483647, %v854
    %v1701 = vand.u32 %v1700, 8388607
    %v1702 = vor.u32 %v1701, 8388608
    %v1703 = vsub.s32 0, %v1702
    %v1704 = vadd.s32 %v1699, 1
    %vm1705 = vcmp.gt.s32.totalorder %v1704, 0
    %v1706 = vsel %vm1705, %v1704, 0
    %v1707 = vshrl.u32 %v1706, 5
    %v1708 = vand.u32 %v1706, 31
    %v1709 = vsub.s32 32, %v1708
    %v1710 = vshrl.u32 683565275, %v1709
    %v1711 = vshll.u32 683565275, %v1708
    %v1712 = vshrl.u32 2475754826, %v1709
    %v1713 = vor.u32 %v1711, %v1712
    %v1714 = vshll.u32 2475754826, %v1708
    %v1715 = vshrl.u32 2131351028, %v1709
    %v1716 = vor.u32 %v1714, %v1715
    %v1717 = vshll.u32 2131351028, %v1708
    %v1718 = vshrl.u32 2102212464, %v1709
    %v1719 = vor.u32 %v1717, %v1718
    %v1720 = vshll.u32 2102212464, %v1708
    %v1721 = vshrl.u32 920167782, %v1709
    %v1722 = vor.u32 %v1720, %v1721
    %v1723 = vshll.u32 920167782, %v1708
    %v1724 = vshrl.u32 1326507024, %v1709
    %v1725 = vor.u32 %v1723, %v1724
    %vm1726 = vcmp.lt.s32.totalorder %v1707, 1
    %vm1727 = vcmp.lt.s32.totalorder %v1707, 2
    %vm1728 = vcmp.lt.s32.totalorder %v1707, 3
    %vm1729 = vcmp.lt.s32.totalorder %v1707, 4
    %v1730 = vsel %vm1726, %v1710, %v1713
    %v1731 = vsel %vm1729, %v1719, 2102212464
    %v1732 = vsel %vm1728, %v1716, %v1731
    %v1733 = vsel %vm1727, %v1730, %v1732
    %v1734 = vsel %vm1726, %v1713, %v1716
    %v1735 = vsel %vm1729, %v1722, 920167782
    %v1736 = vsel %vm1728, %v1719, %v1735
    %v1737 = vsel %vm1727, %v1734, %v1736
    %v1738 = vsel %vm1726, %v1716, %v1719
    %v1739 = vsel %vm1729, %v1725, 1326507024
    %v1740 = vsel %vm1728, %v1722, %v1739
    %v1741 = vsel %vm1727, %v1738, %v1740
    %v1742 = vshll.u32 %v1702, 8
    %v1743 = vmul.u32.u64.compose %v1742, %v1741
    %v1744 = vextract.low.u32 %v1743
    %v1745 = vextract.high.u32 %v1743
    %v1746 = vmul.u32.u64.compose %v1742, %v1737
    %v1747 = vextract.low.u32 %v1746
    %v1748 = vextract.high.u32 %v1746
    %v1749 = vmul.u32 %v1742, %v1733
    %v1750 = vadd.s32 %v1745, %v1747
    %vm1751 = vc.u32 %v1745, %v1747
    %v1752 = vadd.s32 %v1748, 1
    %v1753 = vsel %vm1751, %v1752, %v1748
    %v1754 = vadd.s32 %v1749, %v1753
    %v1755 = vadd.s32 %v1754, 536870912
    %v1756 = vshrl.u32 %v1755, 30
    %v1757 = vshll.u32 %v1756, 30
    %v1758 = vsub.s32 %v1754, %v1757
    %vm1759 = vcmp.lt.s32.totalorder %v1758, 0
    %v1760 = vsub.s32 0, %v1758
    %v1761 = vsel %vm1759, %v1760, %v1758
    %v1762 = vclz %v1761
    %v1763 = vsub.s32 %v1762, 2
    %vm1764 = vcmp.gt.s32.totalorder 0, %v1763
    %v1765 = vsel %vm1764, 0, %v1763
    %v1766 = vsub.s32 32, %v1765
    %v1767 = vshll.u32 %v1758, %v1765
    %v1768 = vshrl.u32 %v1750, %v1766
    %v1769 = vor.u32 %v1767, %v1768
    %v1770 = vsub.s32 4294967266, %v1765
    %v1771 = vadd.s32 %v1770, 127
    %v1772 = vshll.u32 %v1771, 23
    %v1773 = vor.u32 4788187, %v1772
    %v1774 = vand.u32 2147483647, %v1773
    %v1776 = vcvt.s32.f32 %v1769
    %v1777 = vmul.f32 %v1776, %v1774
    %v1778 = vxor.u32 %v1777, 2147483648
    %v1779 = vsel %vm1696, %v1778, %v1777
    %v1780 = vsub.s32 4, %v1756
    %v1781 = vsel %vm1696, %v1780, %v1756
    %v1782 = vsel %vm1695, %v854, %v1779
    %v1783 = vsel %vm1695, 0, %v1781
    %v1784 = vcosq.f32.pop %v1782
    %v1785 = vsinq.f32.pop %v1782
    %vm1786 = vweird.f32 %v854
    %v1787 = vadd.s32 %v1783, 3
    %v1788 = vand.u32 %v1787, 3
    %vm1789 = vcmp.lt.s32.totalorder %v1788, 2
    %vm1790 = vcmp.eq.s32.totalorder %v1788, 0
    %v1791 = vxor.u32 %v1785, 2147483648
    %v1792 = vsel %vm1790, %v1784, %v1791
    %vm1793 = vcmp.eq.s32.totalorder %v1788, 2
    %v1794 = vxor.u32 %v1784, 2147483648
    %v1795 = vsel %vm1793, %v1794, %v1785
    %v1796 = vsel %vm1789, %v1792, %v1795
    %v1797 = vsel %vm1786, nan, %v1796
    %v1798 = vand.u32 2147483647, %v855
    %vm1799 = vcmp.le.f32.partialorder %v1798, 0.7853982
    %vm1800 = vcmp.lt.s32.totalorder %v855, 0
    %v1801 = vand.u32 %v855, 2139095040
    %v1802 = vshrl.u32 %v1801, 23
    %v1803 = vsub.s32 %v1802, 127
    %v1804 = vand.u32 2147483647, %v855
    %v1805 = vand.u32 %v1804, 8388607
    %v1806 = vor.u32 %v1805, 8388608
    %v1807 = vsub.s32 0, %v1806
    %v1808 = vadd.s32 %v1803, 1
    %vm1809 = vcmp.gt.s32.totalorder %v1808, 0
    %v1810 = vsel %vm1809, %v1808, 0
    %v1811 = vshrl.u32 %v1810, 5
    %v1812 = vand.u32 %v1810, 31
    %v1813 = vsub.s32 32, %v1812
    %v1814 = vshrl.u32 683565275, %v1813
    %v1815 = vshll.u32 683565275, %v1812
    %v1816 = vshrl.u32 2475754826, %v1813
    %v1817 = vor.u32 %v1815, %v1816
    %v1818 = vshll.u32 2475754826, %v1812
    %v1819 = vshrl.u32 2131351028, %v1813
    %v1820 = vor.u32 %v1818, %v1819
    %v1821 = vshll.u32 2131351028, %v1812
    %v1822 = vshrl.u32 2102212464, %v1813
    %v1823 = vor.u32 %v1821, %v1822
    %v1824 = vshll.u32 2102212464, %v1812
    %v1825 = vshrl.u32 920167782, %v1813
    %v1826 = vor.u32 %v1824, %v1825
    %v1827 = vshll.u32 920167782, %v1812
    %v1828 = vshrl.u32 1326507024, %v1813
    %v1829 = vor.u32 %v1827, %v1828
    %vm1830 = vcmp.lt.s32.totalorder %v1811, 1
    %vm1831 = vcmp.lt.s32.totalorder %v1811, 2
    %vm1832 = vcmp.lt.s32.totalorder %v1811, 3
    %vm1833 = vcmp.lt.s32.totalorder %v1811, 4
    %v1834 = vsel %vm1830, %v1814, %v1817
    %v1835 = vsel %vm1833, %v1823, 2102212464
    %v1836 = vsel %vm1832, %v1820, %v1835
    %v1837 = vsel %vm1831, %v1834, %v1836
    %v1838 = vsel %vm1830, %v1817, %v1820
    %v1839 = vsel %vm1833, %v1826, 920167782
    %v1840 = vsel %vm1832, %v1823, %v1839
    %v1841 = vsel %vm1831, %v1838, %v1840
    %v1842 = vsel %vm1830, %v1820, %v1823
    %v1843 = vsel %vm1833, %v1829, 1326507024
    %v1844 = vsel %vm1832, %v1826, %v1843
    %v1845 = vsel %vm1831, %v1842, %v1844
    %v1846 = vshll.u32 %v1806, 8
    %v1847 = vmul.u32.u64.compose %v1846, %v1845
    %v1848 = vextract.low.u32 %v1847
    %v1849 = vextract.high.u32 %v1847
    %v1850 = vmul.u32.u64.compose %v1846, %v1841
    %v1851 = vextract.low.u32 %v1850
    %v1852 = vextract.high.u32 %v1850
    %v1853 = vmul.u32 %v1846, %v1837
    %v1854 = vadd.s32 %v1849, %v1851
    %vm1855 = vc.u32 %v1849, %v1851
    %v1856 = vadd.s32 %v1852, 1
    %v1857 = vsel %vm1855, %v1856, %v1852
    %v1858 = vadd.s32 %v1853, %v1857
    %v1859 = vadd.s32 %v1858, 536870912
    %v1860 = vshrl.u32 %v1859, 30
    %v1861 = vshll.u32 %v1860, 30
    %v1862 = vsub.s32 %v1858, %v1861
    %vm1863 = vcmp.lt.s32.totalorder %v1862, 0
    %v1864 = vsub.s32 0, %v1862
    %v1865 = vsel %vm1863, %v1864, %v1862
    %v1866 = vclz %v1865
    %v1867 = vsub.s32 %v1866, 2
    %vm1868 = vcmp.gt.s32.totalorder 0, %v1867
    %v1869 = vsel %vm1868, 0, %v1867
    %v1870 = vsub.s32 32, %v1869
    %v1871 = vshll.u32 %v1862, %v1869
    %v1872 = vshrl.u32 %v1854, %v1870
    %v1873 = vor.u32 %v1871, %v1872
    %v1874 = vsub.s32 4294967266, %v1869
    %v1875 = vadd.s32 %v1874, 127
    %v1876 = vshll.u32 %v1875, 23
    %v1877 = vor.u32 4788187, %v1876
    %v1878 = vand.u32 2147483647, %v1877
    %v1880 = vcvt.s32.f32 %v1873
    %v1881 = vmul.f32 %v1880, %v1878
    %v1882 = vxor.u32 %v1881, 2147483648
    %v1883 = vsel %vm1800, %v1882, %v1881
    %v1884 = vsub.s32 4, %v1860
    %v1885 = vsel %vm1800, %v1884, %v1860
    %v1886 = vsel %vm1799, %v855, %v1883
    %v1887 = vsel %vm1799, 0, %v1885
    %v1888 = vcosq.f32.pop %v1886
    %v1889 = vsinq.f32.pop %v1886
    %vm1890 = vweird.f32 %v855
    %v1891 = vadd.s32 %v1887, 3
    %v1892 = vand.u32 %v1891, 3
    %vm1893 = vcmp.lt.s32.totalorder %v1892, 2
    %vm1894 = vcmp.eq.s32.totalorder %v1892, 0
    %v1895 = vxor.u32 %v1889, 2147483648
    %v1896 = vsel %vm1894, %v1888, %v1895
    %vm1897 = vcmp.eq.s32.totalorder %v1892, 2
    %v1898 = vxor.u32 %v1888, 2147483648
    %v1899 = vsel %vm1897, %v1898, %v1889
    %v1900 = vsel %vm1893, %v1896, %v1899
    %v1901 = vsel %vm1890, nan, %v1900
    %v1902 = vand.u32 2147483647, %v856
    %vm1903 = vcmp.le.f32.partialorder %v1902, 0.7853982
    %vm1904 = vcmp.lt.s32.totalorder %v856, 0
    %v1905 = vand.u32 %v856, 2139095040
    %v1906 = vshrl.u32 %v1905, 23
    %v1907 = vsub.s32 %v1906, 127
    %v1908 = vand.u32 2147483647, %v856
    %v1909 = vand.u32 %v1908, 8388607
    %v1910 = vor.u32 %v1909, 8388608
    %v1911 = vsub.s32 0, %v1910
    %v1912 = vadd.s32 %v1907, 1
    %vm1913 = vcmp.gt.s32.totalorder %v1912, 0
    %v1914 = vsel %vm1913, %v1912, 0
    %v1915 = vshrl.u32 %v1914, 5
    %v1916 = vand.u32 %v1914, 31
    %v1917 = vsub.s32 32, %v1916
    %v1918 = vshrl.u32 683565275, %v1917
    %v1919 = vshll.u32 683565275, %v1916
    %v1920 = vshrl.u32 2475754826, %v1917
    %v1921 = vor.u32 %v1919, %v1920
    %v1922 = vshll.u32 2475754826, %v1916
    %v1923 = vshrl.u32 2131351028, %v1917
    %v1924 = vor.u32 %v1922, %v1923
    %v1925 = vshll.u32 2131351028, %v1916
    %v1926 = vshrl.u32 2102212464, %v1917
    %v1927 = vor.u32 %v1925, %v1926
    %v1928 = vshll.u32 2102212464, %v1916
    %v1929 = vshrl.u32 920167782, %v1917
    %v1930 = vor.u32 %v1928, %v1929
    %v1931 = vshll.u32 920167782, %v1916
    %v1932 = vshrl.u32 1326507024, %v1917
    %v1933 = vor.u32 %v1931, %v1932
    %vm1934 = vcmp.lt.s32.totalorder %v1915, 1
    %vm1935 = vcmp.lt.s32.totalorder %v1915, 2
    %vm1936 = vcmp.lt.s32.totalorder %v1915, 3
    %vm1937 = vcmp.lt.s32.totalorder %v1915, 4
    %v1938 = vsel %vm1934, %v1918, %v1921
    %v1939 = vsel %vm1937, %v1927, 2102212464
    %v1940 = vsel %vm1936, %v1924, %v1939
    %v1941 = vsel %vm1935, %v1938, %v1940
    %v1942 = vsel %vm1934, %v1921, %v1924
    %v1943 = vsel %vm1937, %v1930, 920167782
    %v1944 = vsel %vm1936, %v1927, %v1943
    %v1945 = vsel %vm1935, %v1942, %v1944
    %v1946 = vsel %vm1934, %v1924, %v1927
    %v1947 = vsel %vm1937, %v1933, 1326507024
    %v1948 = vsel %vm1936, %v1930, %v1947
    %v1949 = vsel %vm1935, %v1946, %v1948
    %v1950 = vshll.u32 %v1910, 8
    %v1951 = vmul.u32.u64.compose %v1950, %v1949
    %v1952 = vextract.low.u32 %v1951
    %v1953 = vextract.high.u32 %v1951
    %v1954 = vmul.u32.u64.compose %v1950, %v1945
    %v1955 = vextract.low.u32 %v1954
    %v1956 = vextract.high.u32 %v1954
    %v1957 = vmul.u32 %v1950, %v1941
    %v1958 = vadd.s32 %v1953, %v1955
    %vm1959 = vc.u32 %v1953, %v1955
    %v1960 = vadd.s32 %v1956, 1
    %v1961 = vsel %vm1959, %v1960, %v1956
    %v1962 = vadd.s32 %v1957, %v1961
    %v1963 = vadd.s32 %v1962, 536870912
    %v1964 = vshrl.u32 %v1963, 30
    %v1965 = vshll.u32 %v1964, 30
    %v1966 = vsub.s32 %v1962, %v1965
    %vm1967 = vcmp.lt.s32.totalorder %v1966, 0
    %v1968 = vsub.s32 0, %v1966
    %v1969 = vsel %vm1967, %v1968, %v1966
    %v1970 = vclz %v1969
    %v1971 = vsub.s32 %v1970, 2
    %vm1972 = vcmp.gt.s32.totalorder 0, %v1971
    %v1973 = vsel %vm1972, 0, %v1971
    %v1974 = vsub.s32 32, %v1973
    %v1975 = vshll.u32 %v1966, %v1973
    %v1976 = vshrl.u32 %v1958, %v1974
    %v1977 = vor.u32 %v1975, %v1976
    %v1978 = vsub.s32 4294967266, %v1973
    %v1979 = vadd.s32 %v1978, 127
    %v1980 = vshll.u32 %v1979, 23
    %v1981 = vor.u32 4788187, %v1980
    %v1982 = vand.u32 2147483647, %v1981
    %v1984 = vcvt.s32.f32 %v1977
    %v1985 = vmul.f32 %v1984, %v1982
    %v1986 = vxor.u32 %v1985, 2147483648
    %v1987 = vsel %vm1904, %v1986, %v1985
    %v1988 = vsub.s32 4, %v1964
    %v1989 = vsel %vm1904, %v1988, %v1964
    %v1990 = vsel %vm1903, %v856, %v1987
    %v1991 = vsel %vm1903, 0, %v1989
    %v1992 = vcosq.f32.pop %v1990
    %v1993 = vsinq.f32.pop %v1990
    %vm1994 = vweird.f32 %v856
    %v1995 = vadd.s32 %v1991, 3
    %v1996 = vand.u32 %v1995, 3
    %vm1997 = vcmp.lt.s32.totalorder %v1996, 2
    %vm1998 = vcmp.eq.s32.totalorder %v1996, 0
    %v1999 = vxor.u32 %v1993, 2147483648
    %v2000 = vsel %vm1998, %v1992, %v1999
    %vm2001 = vcmp.eq.s32.totalorder %v1996, 2
    %v2002 = vxor.u32 %v1992, 2147483648
    %v2003 = vsel %vm2001, %v2002, %v1993
    %v2004 = vsel %vm1997, %v2000, %v2003
    %v2005 = vsel %vm1994, nan, %v2004
    %v2006 = vand.u32 2147483647, %v857
    %vm2007 = vcmp.le.f32.partialorder %v2006, 0.7853982
    %vm2008 = vcmp.lt.s32.totalorder %v857, 0
    %v2009 = vand.u32 %v857, 2139095040
    %v2010 = vshrl.u32 %v2009, 23
    %v2011 = vsub.s32 %v2010, 127
    %v2012 = vand.u32 2147483647, %v857
    %v2013 = vand.u32 %v2012, 8388607
    %v2014 = vor.u32 %v2013, 8388608
    %v2015 = vsub.s32 0, %v2014
    %v2016 = vadd.s32 %v2011, 1
    %vm2017 = vcmp.gt.s32.totalorder %v2016, 0
    %v2018 = vsel %vm2017, %v2016, 0
    %v2019 = vshrl.u32 %v2018, 5
    %v2020 = vand.u32 %v2018, 31
    %v2021 = vsub.s32 32, %v2020
    %v2022 = vshrl.u32 683565275, %v2021
    %v2023 = vshll.u32 683565275, %v2020
    %v2024 = vshrl.u32 2475754826, %v2021
    %v2025 = vor.u32 %v2023, %v2024
    %v2026 = vshll.u32 2475754826, %v2020
    %v2027 = vshrl.u32 2131351028, %v2021
    %v2028 = vor.u32 %v2026, %v2027
    %v2029 = vshll.u32 2131351028, %v2020
    %v2030 = vshrl.u32 2102212464, %v2021
    %v2031 = vor.u32 %v2029, %v2030
    %v2032 = vshll.u32 2102212464, %v2020
    %v2033 = vshrl.u32 920167782, %v2021
    %v2034 = vor.u32 %v2032, %v2033
    %v2035 = vshll.u32 920167782, %v2020
    %v2036 = vshrl.u32 1326507024, %v2021
    %v2037 = vor.u32 %v2035, %v2036
    %vm2038 = vcmp.lt.s32.totalorder %v2019, 1
    %vm2039 = vcmp.lt.s32.totalorder %v2019, 2
    %vm2040 = vcmp.lt.s32.totalorder %v2019, 3
    %vm2041 = vcmp.lt.s32.totalorder %v2019, 4
    %v2042 = vsel %vm2038, %v2022, %v2025
    %v2043 = vsel %vm2041, %v2031, 2102212464
    %v2044 = vsel %vm2040, %v2028, %v2043
    %v2045 = vsel %vm2039, %v2042, %v2044
    %v2046 = vsel %vm2038, %v2025, %v2028
    %v2047 = vsel %vm2041, %v2034, 920167782
    %v2048 = vsel %vm2040, %v2031, %v2047
    %v2049 = vsel %vm2039, %v2046, %v2048
    %v2050 = vsel %vm2038, %v2028, %v2031
    %v2051 = vsel %vm2041, %v2037, 1326507024
    %v2052 = vsel %vm2040, %v2034, %v2051
    %v2053 = vsel %vm2039, %v2050, %v2052
    %v2054 = vshll.u32 %v2014, 8
    %v2055 = vmul.u32.u64.compose %v2054, %v2053
    %v2056 = vextract.low.u32 %v2055
    %v2057 = vextract.high.u32 %v2055
    %v2058 = vmul.u32.u64.compose %v2054, %v2049
    %v2059 = vextract.low.u32 %v2058
    %v2060 = vextract.high.u32 %v2058
    %v2061 = vmul.u32 %v2054, %v2045
    %v2062 = vadd.s32 %v2057, %v2059
    %vm2063 = vc.u32 %v2057, %v2059
    %v2064 = vadd.s32 %v2060, 1
    %v2065 = vsel %vm2063, %v2064, %v2060
    %v2066 = vadd.s32 %v2061, %v2065
    %v2067 = vadd.s32 %v2066, 536870912
    %v2068 = vshrl.u32 %v2067, 30
    %v2069 = vshll.u32 %v2068, 30
    %v2070 = vsub.s32 %v2066, %v2069
    %vm2071 = vcmp.lt.s32.totalorder %v2070, 0
    %v2072 = vsub.s32 0, %v2070
    %v2073 = vsel %vm2071, %v2072, %v2070
    %v2074 = vclz %v2073
    %v2075 = vsub.s32 %v2074, 2
    %vm2076 = vcmp.gt.s32.totalorder 0, %v2075
    %v2077 = vsel %vm2076, 0, %v2075
    %v2078 = vsub.s32 32, %v2077
    %v2079 = vshll.u32 %v2070, %v2077
    %v2080 = vshrl.u32 %v2062, %v2078
    %v2081 = vor.u32 %v2079, %v2080
    %v2082 = vsub.s32 4294967266, %v2077
    %v2083 = vadd.s32 %v2082, 127
    %v2084 = vshll.u32 %v2083, 23
    %v2085 = vor.u32 4788187, %v2084
    %v2086 = vand.u32 2147483647, %v2085
    %v2088 = vcvt.s32.f32 %v2081
    %v2089 = vmul.f32 %v2088, %v2086
    %v2090 = vxor.u32 %v2089, 2147483648
    %v2091 = vsel %vm2008, %v2090, %v2089
    %v2092 = vsub.s32 4, %v2068
    %v2093 = vsel %vm2008, %v2092, %v2068
    %v2094 = vsel %vm2007, %v857, %v2091
    %v2095 = vsel %vm2007, 0, %v2093
    %v2096 = vcosq.f32.pop %v2094
    %v2097 = vsinq.f32.pop %v2094
    %vm2098 = vweird.f32 %v857
    %v2099 = vadd.s32 %v2095, 3
    %v2100 = vand.u32 %v2099, 3
    %vm2101 = vcmp.lt.s32.totalorder %v2100, 2
    %vm2102 = vcmp.eq.s32.totalorder %v2100, 0
    %v2103 = vxor.u32 %v2097, 2147483648
    %v2104 = vsel %vm2102, %v2096, %v2103
    %vm2105 = vcmp.eq.s32.totalorder %v2100, 2
    %v2106 = vxor.u32 %v2096, 2147483648
    %v2107 = vsel %vm2105, %v2106, %v2097
    %v2108 = vsel %vm2101, %v2104, %v2107
    %v2109 = vsel %vm2098, nan, %v2108
    %v2110 = vand.u32 2147483647, %v858
    %vm2111 = vcmp.le.f32.partialorder %v2110, 0.7853982
    %vm2112 = vcmp.lt.s32.totalorder %v858, 0
    %v2113 = vand.u32 %v858, 2139095040
    %v2114 = vshrl.u32 %v2113, 23
    %v2115 = vsub.s32 %v2114, 127
    %v2116 = vand.u32 2147483647, %v858
    %v2117 = vand.u32 %v2116, 8388607
    %v2118 = vor.u32 %v2117, 8388608
    %v2119 = vsub.s32 0, %v2118
    %v2120 = vadd.s32 %v2115, 1
    %vm2121 = vcmp.gt.s32.totalorder %v2120, 0
    %v2122 = vsel %vm2121, %v2120, 0
    %v2123 = vshrl.u32 %v2122, 5
    %v2124 = vand.u32 %v2122, 31
    %v2125 = vsub.s32 32, %v2124
    %v2126 = vshrl.u32 683565275, %v2125
    %v2127 = vshll.u32 683565275, %v2124
    %v2128 = vshrl.u32 2475754826, %v2125
    %v2129 = vor.u32 %v2127, %v2128
    %v2130 = vshll.u32 2475754826, %v2124
    %v2131 = vshrl.u32 2131351028, %v2125
    %v2132 = vor.u32 %v2130, %v2131
    %v2133 = vshll.u32 2131351028, %v2124
    %v2134 = vshrl.u32 2102212464, %v2125
    %v2135 = vor.u32 %v2133, %v2134
    %v2136 = vshll.u32 2102212464, %v2124
    %v2137 = vshrl.u32 920167782, %v2125
    %v2138 = vor.u32 %v2136, %v2137
    %v2139 = vshll.u32 920167782, %v2124
    %v2140 = vshrl.u32 1326507024, %v2125
    %v2141 = vor.u32 %v2139, %v2140
    %vm2142 = vcmp.lt.s32.totalorder %v2123, 1
    %vm2143 = vcmp.lt.s32.totalorder %v2123, 2
    %vm2144 = vcmp.lt.s32.totalorder %v2123, 3
    %vm2145 = vcmp.lt.s32.totalorder %v2123, 4
    %v2146 = vsel %vm2142, %v2126, %v2129
    %v2147 = vsel %vm2145, %v2135, 2102212464
    %v2148 = vsel %vm2144, %v2132, %v2147
    %v2149 = vsel %vm2143, %v2146, %v2148
    %v2150 = vsel %vm2142, %v2129, %v2132
    %v2151 = vsel %vm2145, %v2138, 920167782
    %v2152 = vsel %vm2144, %v2135, %v2151
    %v2153 = vsel %vm2143, %v2150, %v2152
    %v2154 = vsel %vm2142, %v2132, %v2135
    %v2155 = vsel %vm2145, %v2141, 1326507024
    %v2156 = vsel %vm2144, %v2138, %v2155
    %v2157 = vsel %vm2143, %v2154, %v2156
    %v2158 = vshll.u32 %v2118, 8
    %v2159 = vmul.u32.u64.compose %v2158, %v2157
    %v2160 = vextract.low.u32 %v2159
    %v2161 = vextract.high.u32 %v2159
    %v2162 = vmul.u32.u64.compose %v2158, %v2153
    %v2163 = vextract.low.u32 %v2162
    %v2164 = vextract.high.u32 %v2162
    %v2165 = vmul.u32 %v2158, %v2149
    %v2166 = vadd.s32 %v2161, %v2163
    %vm2167 = vc.u32 %v2161, %v2163
    %v2168 = vadd.s32 %v2164, 1
    %v2169 = vsel %vm2167, %v2168, %v2164
    %v2170 = vadd.s32 %v2165, %v2169
    %v2171 = vadd.s32 %v2170, 536870912
    %v2172 = vshrl.u32 %v2171, 30
    %v2173 = vshll.u32 %v2172, 30
    %v2174 = vsub.s32 %v2170, %v2173
    %vm2175 = vcmp.lt.s32.totalorder %v2174, 0
    %v2176 = vsub.s32 0, %v2174
    %v2177 = vsel %vm2175, %v2176, %v2174
    %v2178 = vclz %v2177
    %v2179 = vsub.s32 %v2178, 2
    %vm2180 = vcmp.gt.s32.totalorder 0, %v2179
    %v2181 = vsel %vm2180, 0, %v2179
    %v2182 = vsub.s32 32, %v2181
    %v2183 = vshll.u32 %v2174, %v2181
    %v2184 = vshrl.u32 %v2166, %v2182
    %v2185 = vor.u32 %v2183, %v2184
    %v2186 = vsub.s32 4294967266, %v2181
    %v2187 = vadd.s32 %v2186, 127
    %v2188 = vshll.u32 %v2187, 23
    %v2189 = vor.u32 4788187, %v2188
    %v2190 = vand.u32 2147483647, %v2189
    %v2192 = vcvt.s32.f32 %v2185
    %v2193 = vmul.f32 %v2192, %v2190
    %v2194 = vxor.u32 %v2193, 2147483648
    %v2195 = vsel %vm2112, %v2194, %v2193
    %v2196 = vsub.s32 4, %v2172
    %v2197 = vsel %vm2112, %v2196, %v2172
    %v2198 = vsel %vm2111, %v858, %v2195
    %v2199 = vsel %vm2111, 0, %v2197
    %v2200 = vcosq.f32.pop %v2198
    %v2201 = vsinq.f32.pop %v2198
    %vm2202 = vweird.f32 %v858
    %v2203 = vadd.s32 %v2199, 3
    %v2204 = vand.u32 %v2203, 3
    %vm2205 = vcmp.lt.s32.totalorder %v2204, 2
    %vm2206 = vcmp.eq.s32.totalorder %v2204, 0
    %v2207 = vxor.u32 %v2201, 2147483648
    %v2208 = vsel %vm2206, %v2200, %v2207
    %vm2209 = vcmp.eq.s32.totalorder %v2204, 2
    %v2210 = vxor.u32 %v2200, 2147483648
    %v2211 = vsel %vm2209, %v2210, %v2201
    %v2212 = vsel %vm2205, %v2208, %v2211
    %v2213 = vsel %vm2202, nan, %v2212
    %v2214 = vand.u32 2147483647, %v859
    %vm2215 = vcmp.le.f32.partialorder %v2214, 0.7853982
    %vm2216 = vcmp.lt.s32.totalorder %v859, 0
    %v2217 = vand.u32 %v859, 2139095040
    %v2218 = vshrl.u32 %v2217, 23
    %v2219 = vsub.s32 %v2218, 127
    %v2220 = vand.u32 2147483647, %v859
    %v2221 = vand.u32 %v2220, 8388607
    %v2222 = vor.u32 %v2221, 8388608
    %v2223 = vsub.s32 0, %v2222
    %v2224 = vadd.s32 %v2219, 1
    %vm2225 = vcmp.gt.s32.totalorder %v2224, 0
    %v2226 = vsel %vm2225, %v2224, 0
    %v2227 = vshrl.u32 %v2226, 5
    %v2228 = vand.u32 %v2226, 31
    %v2229 = vsub.s32 32, %v2228
    %v2230 = vshrl.u32 683565275, %v2229
    %v2231 = vshll.u32 683565275, %v2228
    %v2232 = vshrl.u32 2475754826, %v2229
    %v2233 = vor.u32 %v2231, %v2232
    %v2234 = vshll.u32 2475754826, %v2228
    %v2235 = vshrl.u32 2131351028, %v2229
    %v2236 = vor.u32 %v2234, %v2235
    %v2237 = vshll.u32 2131351028, %v2228
    %v2238 = vshrl.u32 2102212464, %v2229
    %v2239 = vor.u32 %v2237, %v2238
    %v2240 = vshll.u32 2102212464, %v2228
    %v2241 = vshrl.u32 920167782, %v2229
    %v2242 = vor.u32 %v2240, %v2241
    %v2243 = vshll.u32 920167782, %v2228
    %v2244 = vshrl.u32 1326507024, %v2229
    %v2245 = vor.u32 %v2243, %v2244
    %vm2246 = vcmp.lt.s32.totalorder %v2227, 1
    %vm2247 = vcmp.lt.s32.totalorder %v2227, 2
    %vm2248 = vcmp.lt.s32.totalorder %v2227, 3
    %vm2249 = vcmp.lt.s32.totalorder %v2227, 4
    %v2250 = vsel %vm2246, %v2230, %v2233
    %v2251 = vsel %vm2249, %v2239, 2102212464
    %v2252 = vsel %vm2248, %v2236, %v2251
    %v2253 = vsel %vm2247, %v2250, %v2252
    %v2254 = vsel %vm2246, %v2233, %v2236
    %v2255 = vsel %vm2249, %v2242, 920167782
    %v2256 = vsel %vm2248, %v2239, %v2255
    %v2257 = vsel %vm2247, %v2254, %v2256
    %v2258 = vsel %vm2246, %v2236, %v2239
    %v2259 = vsel %vm2249, %v2245, 1326507024
    %v2260 = vsel %vm2248, %v2242, %v2259
    %v2261 = vsel %vm2247, %v2258, %v2260
    %v2262 = vshll.u32 %v2222, 8
    %v2263 = vmul.u32.u64.compose %v2262, %v2261
    %v2264 = vextract.low.u32 %v2263
    %v2265 = vextract.high.u32 %v2263
    %v2266 = vmul.u32.u64.compose %v2262, %v2257
    %v2267 = vextract.low.u32 %v2266
    %v2268 = vextract.high.u32 %v2266
    %v2269 = vmul.u32 %v2262, %v2253
    %v2270 = vadd.s32 %v2265, %v2267
    %vm2271 = vc.u32 %v2265, %v2267
    %v2272 = vadd.s32 %v2268, 1
    %v2273 = vsel %vm2271, %v2272, %v2268
    %v2274 = vadd.s32 %v2269, %v2273
    %v2275 = vadd.s32 %v2274, 536870912
    %v2276 = vshrl.u32 %v2275, 30
    %v2277 = vshll.u32 %v2276, 30
    %v2278 = vsub.s32 %v2274, %v2277
    %vm2279 = vcmp.lt.s32.totalorder %v2278, 0
    %v2280 = vsub.s32 0, %v2278
    %v2281 = vsel %vm2279, %v2280, %v2278
    %v2282 = vclz %v2281
    %v2283 = vsub.s32 %v2282, 2
    %vm2284 = vcmp.gt.s32.totalorder 0, %v2283
    %v2285 = vsel %vm2284, 0, %v2283
    %v2286 = vsub.s32 32, %v2285
    %v2287 = vshll.u32 %v2278, %v2285
    %v2288 = vshrl.u32 %v2270, %v2286
    %v2289 = vor.u32 %v2287, %v2288
    %v2290 = vsub.s32 4294967266, %v2285
    %v2291 = vadd.s32 %v2290, 127
    %v2292 = vshll.u32 %v2291, 23
    %v2293 = vor.u32 4788187, %v2292
    %v2294 = vand.u32 2147483647, %v2293
    %v2296 = vcvt.s32.f32 %v2289
    %v2297 = vmul.f32 %v2296, %v2294
    %v2298 = vxor.u32 %v2297, 2147483648
    %v2299 = vsel %vm2216, %v2298, %v2297
    %v2300 = vsub.s32 4, %v2276
    %v2301 = vsel %vm2216, %v2300, %v2276
    %v2302 = vsel %vm2215, %v859, %v2299
    %v2303 = vsel %vm2215, 0, %v2301
    %v2304 = vcosq.f32.pop %v2302
    %v2305 = vsinq.f32.pop %v2302
    %vm2306 = vweird.f32 %v859
    %v2307 = vadd.s32 %v2303, 3
    %v2308 = vand.u32 %v2307, 3
    %vm2309 = vcmp.lt.s32.totalorder %v2308, 2
    %vm2310 = vcmp.eq.s32.totalorder %v2308, 0
    %v2311 = vxor.u32 %v2305, 2147483648
    %v2312 = vsel %vm2310, %v2304, %v2311
    %vm2313 = vcmp.eq.s32.totalorder %v2308, 2
    %v2314 = vxor.u32 %v2304, 2147483648
    %v2315 = vsel %vm2313, %v2314, %v2305
    %v2316 = vsel %vm2309, %v2312, %v2315
    %v2317 = vsel %vm2306, nan, %v2316
    %v2318 = vand.u32 2147483647, %v860
    %vm2319 = vcmp.le.f32.partialorder %v2318, 0.7853982
    %vm2320 = vcmp.lt.s32.totalorder %v860, 0
    %v2321 = vand.u32 %v860, 2139095040
    %v2322 = vshrl.u32 %v2321, 23
    %v2323 = vsub.s32 %v2322, 127
    %v2324 = vand.u32 2147483647, %v860
    %v2325 = vand.u32 %v2324, 8388607
    %v2326 = vor.u32 %v2325, 8388608
    %v2327 = vsub.s32 0, %v2326
    %v2328 = vadd.s32 %v2323, 1
    %vm2329 = vcmp.gt.s32.totalorder %v2328, 0
    %v2330 = vsel %vm2329, %v2328, 0
    %v2331 = vshrl.u32 %v2330, 5
    %v2332 = vand.u32 %v2330, 31
    %v2333 = vsub.s32 32, %v2332
    %v2334 = vshrl.u32 683565275, %v2333
    %v2335 = vshll.u32 683565275, %v2332
    %v2336 = vshrl.u32 2475754826, %v2333
    %v2337 = vor.u32 %v2335, %v2336
    %v2338 = vshll.u32 2475754826, %v2332
    %v2339 = vshrl.u32 2131351028, %v2333
    %v2340 = vor.u32 %v2338, %v2339
    %v2341 = vshll.u32 2131351028, %v2332
    %v2342 = vshrl.u32 2102212464, %v2333
    %v2343 = vor.u32 %v2341, %v2342
    %v2344 = vshll.u32 2102212464, %v2332
    %v2345 = vshrl.u32 920167782, %v2333
    %v2346 = vor.u32 %v2344, %v2345
    %v2347 = vshll.u32 920167782, %v2332
    %v2348 = vshrl.u32 1326507024, %v2333
    %v2349 = vor.u32 %v2347, %v2348
    %vm2350 = vcmp.lt.s32.totalorder %v2331, 1
    %vm2351 = vcmp.lt.s32.totalorder %v2331, 2
    %vm2352 = vcmp.lt.s32.totalorder %v2331, 3
    %vm2353 = vcmp.lt.s32.totalorder %v2331, 4
    %v2354 = vsel %vm2350, %v2334, %v2337
    %v2355 = vsel %vm2353, %v2343, 2102212464
    %v2356 = vsel %vm2352, %v2340, %v2355
    %v2357 = vsel %vm2351, %v2354, %v2356
    %v2358 = vsel %vm2350, %v2337, %v2340
    %v2359 = vsel %vm2353, %v2346, 920167782
    %v2360 = vsel %vm2352, %v2343, %v2359
    %v2361 = vsel %vm2351, %v2358, %v2360
    %v2362 = vsel %vm2350, %v2340, %v2343
    %v2363 = vsel %vm2353, %v2349, 1326507024
    %v2364 = vsel %vm2352, %v2346, %v2363
    %v2365 = vsel %vm2351, %v2362, %v2364
    %v2366 = vshll.u32 %v2326, 8
    %v2367 = vmul.u32.u64.compose %v2366, %v2365
    %v2368 = vextract.low.u32 %v2367
    %v2369 = vextract.high.u32 %v2367
    %v2370 = vmul.u32.u64.compose %v2366, %v2361
    %v2371 = vextract.low.u32 %v2370
    %v2372 = vextract.high.u32 %v2370
    %v2373 = vmul.u32 %v2366, %v2357
    %v2374 = vadd.s32 %v2369, %v2371
    %vm2375 = vc.u32 %v2369, %v2371
    %v2376 = vadd.s32 %v2372, 1
    %v2377 = vsel %vm2375, %v2376, %v2372
    %v2378 = vadd.s32 %v2373, %v2377
    %v2379 = vadd.s32 %v2378, 536870912
    %v2380 = vshrl.u32 %v2379, 30
    %v2381 = vshll.u32 %v2380, 30
    %v2382 = vsub.s32 %v2378, %v2381
    %vm2383 = vcmp.lt.s32.totalorder %v2382, 0
    %v2384 = vsub.s32 0, %v2382
    %v2385 = vsel %vm2383, %v2384, %v2382
    %v2386 = vclz %v2385
    %v2387 = vsub.s32 %v2386, 2
    %vm2388 = vcmp.gt.s32.totalorder 0, %v2387
    %v2389 = vsel %vm2388, 0, %v2387
    %v2390 = vsub.s32 32, %v2389
    %v2391 = vshll.u32 %v2382, %v2389
    %v2392 = vshrl.u32 %v2374, %v2390
    %v2393 = vor.u32 %v2391, %v2392
    %v2394 = vsub.s32 4294967266, %v2389
    %v2395 = vadd.s32 %v2394, 127
    %v2396 = vshll.u32 %v2395, 23
    %v2397 = vor.u32 4788187, %v2396
    %v2398 = vand.u32 2147483647, %v2397
    %v2400 = vcvt.s32.f32 %v2393
    %v2401 = vmul.f32 %v2400, %v2398
    %v2402 = vxor.u32 %v2401, 2147483648
    %v2403 = vsel %vm2320, %v2402, %v2401
    %v2404 = vsub.s32 4, %v2380
    %v2405 = vsel %vm2320, %v2404, %v2380
    %v2406 = vsel %vm2319, %v860, %v2403
    %v2407 = vsel %vm2319, 0, %v2405
    %v2408 = vcosq.f32.pop %v2406
    %v2409 = vsinq.f32.pop %v2406
    %vm2410 = vweird.f32 %v860
    %v2411 = vadd.s32 %v2407, 3
    %v2412 = vand.u32 %v2411, 3
    %vm2413 = vcmp.lt.s32.totalorder %v2412, 2
    %vm2414 = vcmp.eq.s32.totalorder %v2412, 0
    %v2415 = vxor.u32 %v2409, 2147483648
    %v2416 = vsel %vm2414, %v2408, %v2415
    %vm2417 = vcmp.eq.s32.totalorder %v2412, 2
    %v2418 = vxor.u32 %v2408, 2147483648
    %v2419 = vsel %vm2417, %v2418, %v2409
    %v2420 = vsel %vm2413, %v2416, %v2419
    %v2421 = vsel %vm2410, nan, %v2420
    %v2422 = vand.u32 2147483647, %v861
    %vm2423 = vcmp.le.f32.partialorder %v2422, 0.7853982
    %vm2424 = vcmp.lt.s32.totalorder %v861, 0
    %v2425 = vand.u32 %v861, 2139095040
    %v2426 = vshrl.u32 %v2425, 23
    %v2427 = vsub.s32 %v2426, 127
    %v2428 = vand.u32 2147483647, %v861
    %v2429 = vand.u32 %v2428, 8388607
    %v2430 = vor.u32 %v2429, 8388608
    %v2431 = vsub.s32 0, %v2430
    %v2432 = vadd.s32 %v2427, 1
    %vm2433 = vcmp.gt.s32.totalorder %v2432, 0
    %v2434 = vsel %vm2433, %v2432, 0
    %v2435 = vshrl.u32 %v2434, 5
    %v2436 = vand.u32 %v2434, 31
    %v2437 = vsub.s32 32, %v2436
    %v2438 = vshrl.u32 683565275, %v2437
    %v2439 = vshll.u32 683565275, %v2436
    %v2440 = vshrl.u32 2475754826, %v2437
    %v2441 = vor.u32 %v2439, %v2440
    %v2442 = vshll.u32 2475754826, %v2436
    %v2443 = vshrl.u32 2131351028, %v2437
    %v2444 = vor.u32 %v2442, %v2443
    %v2445 = vshll.u32 2131351028, %v2436
    %v2446 = vshrl.u32 2102212464, %v2437
    %v2447 = vor.u32 %v2445, %v2446
    %v2448 = vshll.u32 2102212464, %v2436
    %v2449 = vshrl.u32 920167782, %v2437
    %v2450 = vor.u32 %v2448, %v2449
    %v2451 = vshll.u32 920167782, %v2436
    %v2452 = vshrl.u32 1326507024, %v2437
    %v2453 = vor.u32 %v2451, %v2452
    %vm2454 = vcmp.lt.s32.totalorder %v2435, 1
    %vm2455 = vcmp.lt.s32.totalorder %v2435, 2
    %vm2456 = vcmp.lt.s32.totalorder %v2435, 3
    %vm2457 = vcmp.lt.s32.totalorder %v2435, 4
    %v2458 = vsel %vm2454, %v2438, %v2441
    %v2459 = vsel %vm2457, %v2447, 2102212464
    %v2460 = vsel %vm2456, %v2444, %v2459
    %v2461 = vsel %vm2455, %v2458, %v2460
    %v2462 = vsel %vm2454, %v2441, %v2444
    %v2463 = vsel %vm2457, %v2450, 920167782
    %v2464 = vsel %vm2456, %v2447, %v2463
    %v2465 = vsel %vm2455, %v2462, %v2464
    %v2466 = vsel %vm2454, %v2444, %v2447
    %v2467 = vsel %vm2457, %v2453, 1326507024
    %v2468 = vsel %vm2456, %v2450, %v2467
    %v2469 = vsel %vm2455, %v2466, %v2468
    %v2470 = vshll.u32 %v2430, 8
    %v2471 = vmul.u32.u64.compose %v2470, %v2469
    %v2472 = vextract.low.u32 %v2471
    %v2473 = vextract.high.u32 %v2471
    %v2474 = vmul.u32.u64.compose %v2470, %v2465
    %v2475 = vextract.low.u32 %v2474
    %v2476 = vextract.high.u32 %v2474
    %v2477 = vmul.u32 %v2470, %v2461
    %v2478 = vadd.s32 %v2473, %v2475
    %vm2479 = vc.u32 %v2473, %v2475
    %v2480 = vadd.s32 %v2476, 1
    %v2481 = vsel %vm2479, %v2480, %v2476
    %v2482 = vadd.s32 %v2477, %v2481
    %v2483 = vadd.s32 %v2482, 536870912
    %v2484 = vshrl.u32 %v2483, 30
    %v2485 = vshll.u32 %v2484, 30
    %v2486 = vsub.s32 %v2482, %v2485
    %vm2487 = vcmp.lt.s32.totalorder %v2486, 0
    %v2488 = vsub.s32 0, %v2486
    %v2489 = vsel %vm2487, %v2488, %v2486
    %v2490 = vclz %v2489
    %v2491 = vsub.s32 %v2490, 2
    %vm2492 = vcmp.gt.s32.totalorder 0, %v2491
    %v2493 = vsel %vm2492, 0, %v2491
    %v2494 = vsub.s32 32, %v2493
    %v2495 = vshll.u32 %v2486, %v2493
    %v2496 = vshrl.u32 %v2478, %v2494
    %v2497 = vor.u32 %v2495, %v2496
    %v2498 = vsub.s32 4294967266, %v2493
    %v2499 = vadd.s32 %v2498, 127
    %v2500 = vshll.u32 %v2499, 23
    %v2501 = vor.u32 4788187, %v2500
    %v2502 = vand.u32 2147483647, %v2501
    %v2504 = vcvt.s32.f32 %v2497
    %v2505 = vmul.f32 %v2504, %v2502
    %v2506 = vxor.u32 %v2505, 2147483648
    %v2507 = vsel %vm2424, %v2506, %v2505
    %v2508 = vsub.s32 4, %v2484
    %v2509 = vsel %vm2424, %v2508, %v2484
    %v2510 = vsel %vm2423, %v861, %v2507
    %v2511 = vsel %vm2423, 0, %v2509
    %v2512 = vcosq.f32.pop %v2510
    %v2513 = vsinq.f32.pop %v2510
    %vm2514 = vweird.f32 %v861
    %v2515 = vadd.s32 %v2511, 3
    %v2516 = vand.u32 %v2515, 3
    %vm2517 = vcmp.lt.s32.totalorder %v2516, 2
    %vm2518 = vcmp.eq.s32.totalorder %v2516, 0
    %v2519 = vxor.u32 %v2513, 2147483648
    %v2520 = vsel %vm2518, %v2512, %v2519
    %vm2521 = vcmp.eq.s32.totalorder %v2516, 2
    %v2522 = vxor.u32 %v2512, 2147483648
    %v2523 = vsel %vm2521, %v2522, %v2513
    %v2524 = vsel %vm2517, %v2520, %v2523
    %v2525 = vsel %vm2514, nan, %v2524
    %2526 = vst [vmem:[#allocation2] sm:$0xff] %v965
    %2527 = vst [vmem:[#allocation2 + $0x8] sm:$0xff] %v1069
    %2528 = vst [vmem:[#allocation2 + $0x10] sm:$0xff] %v1173
    %2529 = vst [vmem:[#allocation2 + $0x18] sm:$0xff] %v1277
    %2530 = vst [vmem:[#allocation2 + $0x20] sm:$0xff] %v1381
    %2531 = vst [vmem:[#allocation2 + $0x28] sm:$0xff] %v1485
    %2532 = vst [vmem:[#allocation2 + $0x30] sm:$0xff] %v1589
    %2533 = vst [vmem:[#allocation2 + $0x38] sm:$0xff] %v1693
    %2534 = vst [vmem:[#allocation2 + $0x40] sm:$0xff] %v1797
    %2535 = vst [vmem:[#allocation2 + $0x48] sm:$0xff] %v1901
    %2536 = vst [vmem:[#allocation2 + $0x50] sm:$0xff] %v2005
    %2537 = vst [vmem:[#allocation2 + $0x58] sm:$0xff] %v2109
    %2538 = vst [vmem:[#allocation2 + $0x60] sm:$0xff] %v2213
    %2539 = vst [vmem:[#allocation2 + $0x68] sm:$0xff] %v2317
    %2540 = vst [vmem:[#allocation2 + $0x70] sm:$0xff] %v2421
    %2541 = vst [vmem:[#allocation2 + $0x78] sm:$0xff] %v2525
    // Predicated region
    $region14: #{tpu_custom_call.1} parent=1 // pred_check
      _
    $region15: #{tpu_custom_call.1} parent=1 // pred_check_branch
      %2543 = sbr.rel (0) target = $region17
    $region16: #{tpu_custom_call.1} parent=1 // pred_region
      %s2545 = ssub.s32 2048, 2048
      %2546 = vsyncadd [#allocation3], %s2545
      %s2547 = sshll.u32 [#allocation2], 4
      %s2548 = int_to_ptr.vmem [resolvable:$true] %s2547
      %2553 = dma.vmem_to_hbm [thread:$0]  %s2548, 2048, %s3, [#allocation3], 128, 128, 8
    $region17: #{tpu_custom_call.1} parent=1 // pred_fallthru
      _
    // Predicated region
    $region18: #{tpu_custom_call.1} parent=1 // pred_check
      _
    $region19: #{tpu_custom_call.1} parent=1 // pred_check_branch
      %2555 = sbr.rel (0) target = $region21
    $region20: #{tpu_custom_call.1} parent=1 // pred_region
      %2556 = dma.done [#allocation3], 2048
    $region21: #{tpu_custom_call.1} parent=1 // pred_fallthru
      _
    %2557 = vsyncpa [#allocation3], 1

</llo_original>
